<compile_context>
chip_gen: v6e
topology: v6e:2x2x1
jax: 0.10.0
libtpu: 0.0.40
codegen_flags: <defaults>
</compile_context>

<pallas_src>
import functools
import math

import jax
import jax.numpy as jnp
from jax import lax
from jax.experimental import pallas as pl
from jax.experimental.pallas import tpu as pltpu


# ---------------------------------------------------------------------------
# Fused MHA kernel: one grid step == one batch element.
# ---------------------------------------------------------------------------

def _mha_fused_kernel(q_in_ref, k_in_ref, v_in_ref,
                      wq_ref, bq_ref, wk_ref, bk_ref, wv_ref, bv_ref,
                      wo_ref, bo_ref, o_ref, *, h):
    # Activations refs are (1, S, D); weight refs are (D, D) pre-transposed to
    # (in, out); bias refs are (1, D).
    xq = q_in_ref[0]  # (S, D)
    xk = k_in_ref[0]  # (S, D)
    xv = v_in_ref[0]  # (S, D)

    # Q/K/V projections — all inside the same kernel, f32 accumulation.
    q = jnp.dot(xq, wq_ref[...], preferred_element_type=jnp.float32) + bq_ref[...]
    k = jnp.dot(xk, wk_ref[...], preferred_element_type=jnp.float32) + bk_ref[...]
    v = jnp.dot(xv, wv_ref[...], preferred_element_type=jnp.float32) + bv_ref[...]

    S, D = q.shape
    d_k = D // h

    # Fold the 1/sqrt(d_k) scale into q (cheaper than scaling the S x S scores).
    q = q * (1.0 / math.sqrt(d_k))

    # Per-head attention. Heads remain packed along the feature axis of the
    # (S, D) tile; static slices only — no head transpose / relayout.
    ctx_heads = []
    for hd in range(h):
        lo = hd * d_k
        qh = q[:, lo:lo + d_k]   # (S, d_k)
        kh = k[:, lo:lo + d_k]   # (S, d_k)
        vh = v[:, lo:lo + d_k]   # (S, d_k)

        # Contract over d_k of BOTH operands -> no explicit kh.T transpose.
        scores = lax.dot_general(
            qh, kh, (((1,), (1,)), ((), ())),
            preferred_element_type=jnp.float32)                       # (S, S)

        m = jnp.max(scores, axis=-1, keepdims=True)
        e = jnp.exp(scores - m)
        denom = jnp.sum(e, axis=-1, keepdims=True)                    # (S, 1)
        # Reciprocal on the EUP slot + broadcast multiply, instead of an
        # S x S per-element divide on the VPU.
        p = e * pl.reciprocal(denom, approx=True)

        ctx_heads.append(
            jnp.dot(p, vh, preferred_element_type=jnp.float32))       # (S, d_k)

    ctx = jnp.concatenate(ctx_heads, axis=-1)                          # (S, D)

    # Output projection, fused in the same kernel.
    out = jnp.dot(ctx, wo_ref[...], preferred_element_type=jnp.float32) + bo_ref[...]
    o_ref[0] = out.astype(o_ref.dtype)


def multi_head_attention(prepared_params, query, key, value, h):
    """query/key/value: (B, S, D) -> (B, S, D). Single fused pallas_call."""
    B, S, D = query.shape
    kernel = functools.partial(_mha_fused_kernel, h=h)

    act_spec = pl.BlockSpec((1, S, D), lambda b: (b, 0, 0))
    w_spec = pl.BlockSpec((D, D), lambda b: (0, 0))
    b_spec = pl.BlockSpec((1, D), lambda b: (0, 0))

    return pl.pallas_call(
        kernel,
        out_shape=jax.ShapeDtypeStruct((B, S, D), query.dtype),
        grid=(B,),
        in_specs=[act_spec, act_spec, act_spec,
                  w_spec, b_spec,   # wq, bq
                  w_spec, b_spec,   # wk, bk
                  w_spec, b_spec,   # wv, bv
                  w_spec, b_spec],  # wo, bo
        out_specs=act_spec,
        compiler_params=pltpu.CompilerParams(
            dimension_semantics=("parallel",)),   # batch axis sharded across TCs
    )(query, key, value,
      prepared_params["wq_wT"], prepared_params["wq_b2"],
      prepared_params["wk_wT"], prepared_params["wk_b2"],
      prepared_params["wv_wT"], prepared_params["wv_b2"],
      prepared_params["wo_wT"], prepared_params["wo_b2"])


def prepare_params(params):
    """PyTorch nn.Linear layout (out,in)/(out,) -> kernel layout (in,out)/(1,out).

    Done ONCE outside the forward so no per-call weight transpose is emitted.
    """
    out = {}
    for name in ("wq", "wk", "wv", "wo"):
        out[name + "_wT"] = jnp.asarray(params[name + "_w"]).T.copy()
        out[name + "_b2"] = jnp.asarray(params[name + "_b"]).reshape(1, -1)
    return out


# ---------------------------------------------------------------------------
# Reference (plain JAX, PyTorch semantics) for the correctness check.
# ---------------------------------------------------------------------------

def reference_mha(params, query, key, value, h):
    B, Sq, D = query.shape
    d_k = D // h

    def lin(x, w, b):
        return x @ w.T + b

    q = lin(query, params["wq_w"], params["wq_b"]).reshape(B, Sq, h, d_k).transpose(0, 2, 1, 3)
    k = lin(key, params["wk_w"], params["wk_b"]).reshape(B, -1, h, d_k).transpose(0, 2, 1, 3)
    v = lin(value, params["wv_w"], params["wv_b"]).reshape(B, -1, h, d_k).transpose(0, 2, 1, 3)
    scores = jnp.einsum("bhqd,bhkd->bhqk", q, k) / math.sqrt(d_k)
    p = jax.nn.softmax(scores, axis=-1)
    x = jnp.einsum("bhqk,bhkd->bhqd", p, v)
    x = x.transpose(0, 2, 1, 3).reshape(B, Sq, D)
    return lin(x, params["wo_w"], params["wo_b"])


# ---------------------------------------------------------------------------
# Main
# ---------------------------------------------------------------------------

if __name__ == "__main__":
    B, S, D, H = 2, 8, 32, 4  # batch, seq, d_model, heads (d_k = 8)

    key0 = jax.random.PRNGKey(0)
    ks = jax.random.split(key0, 12)

    scale = 1.0 / math.sqrt(D)
    params = {
        "wq_w": jax.random.uniform(ks[0], (D, D), jnp.float32, -scale, scale),
        "wq_b": jax.random.uniform(ks[1], (D,), jnp.float32, -scale, scale),
        "wk_w": jax.random.uniform(ks[2], (D, D), jnp.float32, -scale, scale),
        "wk_b": jax.random.uniform(ks[3], (D,), jnp.float32, -scale, scale),
        "wv_w": jax.random.uniform(ks[4], (D, D), jnp.float32, -scale, scale),
        "wv_b": jax.random.uniform(ks[5], (D,), jnp.float32, -scale, scale),
        "wo_w": jax.random.uniform(ks[6], (D, D), jnp.float32, -scale, scale),
        "wo_b": jax.random.uniform(ks[7], (D,), jnp.float32, -scale, scale),
    }

    query = jax.random.normal(ks[8], (B, S, D), jnp.float32)
    keyx = jax.random.normal(ks[9], (B, S, D), jnp.float32)
    value = jax.random.normal(ks[10], (B, S, D), jnp.float32)

    prepared = prepare_params(params)  # one-time weight transpose / bias reshape

    out = multi_head_attention(prepared, query, keyx, value, H)
    out = jax.block_until_ready(out)

    ref = reference_mha(params, query, keyx, value, H)
    assert out.shape == (B, S, D)
    # Slightly loose tolerance to accommodate the approximate (EUP) reciprocal
    # in the softmax normalization.
    assert jnp.allclose(out, ref, atol=2e-3, rtol=2e-3), (
        f"max err = {jnp.max(jnp.abs(out - ref))}"
    )

    print("KERNEL_OK")
</pallas_src>

<mosaic_0001>
module attributes {stable_mosaic.version = 11 : i64} {
  func.func @_mha_fused_kernel(%arg0: i32, %arg1: memref<1x8x32xf32, #tpu.memory_space<vmem>>, %arg2: memref<1x8x32xf32, #tpu.memory_space<vmem>>, %arg3: memref<1x8x32xf32, #tpu.memory_space<vmem>>, %arg4: memref<32x32xf32, #tpu.memory_space<vmem>>, %arg5: memref<1x32xf32, #tpu.memory_space<vmem>>, %arg6: memref<32x32xf32, #tpu.memory_space<vmem>>, %arg7: memref<1x32xf32, #tpu.memory_space<vmem>>, %arg8: memref<32x32xf32, #tpu.memory_space<vmem>>, %arg9: memref<1x32xf32, #tpu.memory_space<vmem>>, %arg10: memref<32x32xf32, #tpu.memory_space<vmem>>, %arg11: memref<1x32xf32, #tpu.memory_space<vmem>>, %arg12: memref<1x8x32xf32, #tpu.memory_space<vmem>>) attributes {dimension_semantics = [#tpu.dimension_semantics<parallel>], iteration_bounds = array<i64: 2>, scalar_prefetch = 0 : i64, scratch_operands = 0 : i64, tpu.core_type = #tpu.core_type<tc>, window_params = [{transform_indices = @transform_0, window_bounds = array<i64: 1, 8, 32>}, {transform_indices = @transform_1, window_bounds = array<i64: 1, 8, 32>}, {transform_indices = @transform_2, window_bounds = array<i64: 1, 8, 32>}, {pipeline_mode = #tpu.pipeline_mode<synchronous>, transform_indices = @transform_3, window_bounds = array<i64: 32, 32>}, {pipeline_mode = #tpu.pipeline_mode<synchronous>, transform_indices = @transform_4, window_bounds = array<i64: 1, 32>}, {pipeline_mode = #tpu.pipeline_mode<synchronous>, transform_indices = @transform_5, window_bounds = array<i64: 32, 32>}, {pipeline_mode = #tpu.pipeline_mode<synchronous>, transform_indices = @transform_6, window_bounds = array<i64: 1, 32>}, {pipeline_mode = #tpu.pipeline_mode<synchronous>, transform_indices = @transform_7, window_bounds = array<i64: 32, 32>}, {pipeline_mode = #tpu.pipeline_mode<synchronous>, transform_indices = @transform_8, window_bounds = array<i64: 1, 32>}, {pipeline_mode = #tpu.pipeline_mode<synchronous>, transform_indices = @transform_9, window_bounds = array<i64: 32, 32>}, {pipeline_mode = #tpu.pipeline_mode<synchronous>, transform_indices = @transform_10, window_bounds = array<i64: 1, 32>}, {transform_indices = @transform_11, window_bounds = array<i64: 1, 8, 32>}]} {
    %c0 = arith.constant 0 : index
    %c0_0 = arith.constant 0 : index
    %c0_1 = arith.constant 0 : index
    %0 = vector.load %arg1[%c0, %c0_0, %c0_1] : memref<1x8x32xf32, #tpu.memory_space<vmem>>, vector<1x8x32xf32>
    %1 = vector.shape_cast %0 : vector<1x8x32xf32> to vector<8x32xf32>
    %c0_2 = arith.constant 0 : index
    %c0_3 = arith.constant 0 : index
    %c0_4 = arith.constant 0 : index
    %2 = vector.load %arg2[%c0_2, %c0_3, %c0_4] : memref<1x8x32xf32, #tpu.memory_space<vmem>>, vector<1x8x32xf32>
    %3 = vector.shape_cast %2 : vector<1x8x32xf32> to vector<8x32xf32>
    %c0_5 = arith.constant 0 : index
    %c0_6 = arith.constant 0 : index
    %c0_7 = arith.constant 0 : index
    %4 = vector.load %arg3[%c0_5, %c0_6, %c0_7] : memref<1x8x32xf32, #tpu.memory_space<vmem>>, vector<1x8x32xf32>
    %5 = vector.shape_cast %4 : vector<1x8x32xf32> to vector<8x32xf32>
    %c0_8 = arith.constant 0 : index
    %c0_9 = arith.constant 0 : index
    %6 = vector.load %arg4[%c0_8, %c0_9] : memref<32x32xf32, #tpu.memory_space<vmem>>, vector<32x32xf32>
    %cst = arith.constant dense<0.000000e+00> : vector<8x32xf32>
    %7 = tpu.matmul %1, %6, %cst {dimension_numbers = #tpu.dot_dimension_numbers<[1], [0], [0], [1], [0, 0, 1, 1], [], []>} : vector<8x32xf32>, vector<32x32xf32>, vector<8x32xf32> -> vector<8x32xf32>
    %c0_10 = arith.constant 0 : index
    %c0_11 = arith.constant 0 : index
    %8 = vector.load %arg5[%c0_10, %c0_11] : memref<1x32xf32, #tpu.memory_space<vmem>>, vector<1x32xf32>
    %9 = vector.broadcast %8 : vector<1x32xf32> to vector<8x32xf32>
    %10 = arith.addf %7, %9 : vector<8x32xf32>
    %c0_12 = arith.constant 0 : index
    %c0_13 = arith.constant 0 : index
    %11 = vector.load %arg6[%c0_12, %c0_13] : memref<32x32xf32, #tpu.memory_space<vmem>>, vector<32x32xf32>
    %cst_14 = arith.constant dense<0.000000e+00> : vector<8x32xf32>
    %12 = tpu.matmul %3, %11, %cst_14 {dimension_numbers = #tpu.dot_dimension_numbers<[1], [0], [0], [1], [0, 0, 1, 1], [], []>} : vector<8x32xf32>, vector<32x32xf32>, vector<8x32xf32> -> vector<8x32xf32>
    %c0_15 = arith.constant 0 : index
    %c0_16 = arith.constant 0 : index
    %13 = vector.load %arg7[%c0_15, %c0_16] : memref<1x32xf32, #tpu.memory_space<vmem>>, vector<1x32xf32>
    %14 = vector.broadcast %13 : vector<1x32xf32> to vector<8x32xf32>
    %15 = arith.addf %12, %14 : vector<8x32xf32>
    %c0_17 = arith.constant 0 : index
    %c0_18 = arith.constant 0 : index
    %16 = vector.load %arg8[%c0_17, %c0_18] : memref<32x32xf32, #tpu.memory_space<vmem>>, vector<32x32xf32>
    %cst_19 = arith.constant dense<0.000000e+00> : vector<8x32xf32>
    %17 = tpu.matmul %5, %16, %cst_19 {dimension_numbers = #tpu.dot_dimension_numbers<[1], [0], [0], [1], [0, 0, 1, 1], [], []>} : vector<8x32xf32>, vector<32x32xf32>, vector<8x32xf32> -> vector<8x32xf32>
    %c0_20 = arith.constant 0 : index
    %c0_21 = arith.constant 0 : index
    %18 = vector.load %arg9[%c0_20, %c0_21] : memref<1x32xf32, #tpu.memory_space<vmem>>, vector<1x32xf32>
    %19 = vector.broadcast %18 : vector<1x32xf32> to vector<8x32xf32>
    %20 = arith.addf %17, %19 : vector<8x32xf32>
    %cst_22 = arith.constant 0.353553385 : f32
    %21 = vector.broadcast %cst_22 : f32 to vector<8x32xf32>
    %22 = arith.mulf %10, %21 : vector<8x32xf32>
    %23 = vector.extract_strided_slice %22 {offsets = [0, 0], sizes = [8, 8], strides = [1, 1]} : vector<8x32xf32> to vector<8x8xf32>
    %24 = vector.extract_strided_slice %15 {offsets = [0, 0], sizes = [8, 8], strides = [1, 1]} : vector<8x32xf32> to vector<8x8xf32>
    %25 = vector.extract_strided_slice %20 {offsets = [0, 0], sizes = [8, 8], strides = [1, 1]} : vector<8x32xf32> to vector<8x8xf32>
    %cst_23 = arith.constant dense<0.000000e+00> : vector<8x8xf32>
    %26 = tpu.matmul %23, %24, %cst_23 {dimension_numbers = #tpu.dot_dimension_numbers<[1], [1], [0], [0], [0, 0, 1, 0], [], []>} : vector<8x8xf32>, vector<8x8xf32>, vector<8x8xf32> -> vector<8x8xf32>
    %cst_24 = arith.constant dense<0xFF800000> : vector<8xf32>
    %27 = vector.multi_reduction <maximumf>, %26, %cst_24 [1] : vector<8x8xf32> to vector<8xf32>
    %28 = vector.shape_cast %27 : vector<8xf32> to vector<8x1xf32>
    %29 = vector.broadcast %28 : vector<8x1xf32> to vector<8x8xf32>
    %30 = arith.subf %26, %29 : vector<8x8xf32>
    %31 = math.exp %30 : vector<8x8xf32>
    %cst_25 = arith.constant dense<0.000000e+00> : vector<8xf32>
    %32 = vector.multi_reduction <add>, %31, %cst_25 [1] : vector<8x8xf32> to vector<8xf32>
    %33 = vector.shape_cast %32 : vector<8xf32> to vector<8x1xf32>
    %34 = tpu.reciprocal %33 {approx = true} : vector<8x1xf32> -> vector<8x1xf32>
    %35 = vector.broadcast %34 : vector<8x1xf32> to vector<8x8xf32>
    %36 = arith.mulf %31, %35 : vector<8x8xf32>
    %cst_26 = arith.constant dense<0.000000e+00> : vector<8x8xf32>
    %37 = tpu.matmul %36, %25, %cst_26 {dimension_numbers = #tpu.dot_dimension_numbers<[1], [0], [0], [1], [0, 0, 1, 1], [], []>} : vector<8x8xf32>, vector<8x8xf32>, vector<8x8xf32> -> vector<8x8xf32>
    %38 = vector.extract_strided_slice %22 {offsets = [0, 8], sizes = [8, 8], strides = [1, 1]} : vector<8x32xf32> to vector<8x8xf32>
    %39 = vector.extract_strided_slice %15 {offsets = [0, 8], sizes = [8, 8], strides = [1, 1]} : vector<8x32xf32> to vector<8x8xf32>
    %40 = vector.extract_strided_slice %20 {offsets = [0, 8], sizes = [8, 8], strides = [1, 1]} : vector<8x32xf32> to vector<8x8xf32>
    %cst_27 = arith.constant dense<0.000000e+00> : vector<8x8xf32>
    %41 = tpu.matmul %38, %39, %cst_27 {dimension_numbers = #tpu.dot_dimension_numbers<[1], [1], [0], [0], [0, 0, 1, 0], [], []>} : vector<8x8xf32>, vector<8x8xf32>, vector<8x8xf32> -> vector<8x8xf32>
    %cst_28 = arith.constant dense<0xFF800000> : vector<8xf32>
    %42 = vector.multi_reduction <maximumf>, %41, %cst_28 [1] : vector<8x8xf32> to vector<8xf32>
    %43 = vector.shape_cast %42 : vector<8xf32> to vector<8x1xf32>
    %44 = vector.broadcast %43 : vector<8x1xf32> to vector<8x8xf32>
    %45 = arith.subf %41, %44 : vector<8x8xf32>
    %46 = math.exp %45 : vector<8x8xf32>
    %cst_29 = arith.constant dense<0.000000e+00> : vector<8xf32>
    %47 = vector.multi_reduction <add>, %46, %cst_29 [1] : vector<8x8xf32> to vector<8xf32>
    %48 = vector.shape_cast %47 : vector<8xf32> to vector<8x1xf32>
    %49 = tpu.reciprocal %48 {approx = true} : vector<8x1xf32> -> vector<8x1xf32>
    %50 = vector.broadcast %49 : vector<8x1xf32> to vector<8x8xf32>
    %51 = arith.mulf %46, %50 : vector<8x8xf32>
    %cst_30 = arith.constant dense<0.000000e+00> : vector<8x8xf32>
    %52 = tpu.matmul %51, %40, %cst_30 {dimension_numbers = #tpu.dot_dimension_numbers<[1], [0], [0], [1], [0, 0, 1, 1], [], []>} : vector<8x8xf32>, vector<8x8xf32>, vector<8x8xf32> -> vector<8x8xf32>
    %53 = vector.extract_strided_slice %22 {offsets = [0, 16], sizes = [8, 8], strides = [1, 1]} : vector<8x32xf32> to vector<8x8xf32>
    %54 = vector.extract_strided_slice %15 {offsets = [0, 16], sizes = [8, 8], strides = [1, 1]} : vector<8x32xf32> to vector<8x8xf32>
    %55 = vector.extract_strided_slice %20 {offsets = [0, 16], sizes = [8, 8], strides = [1, 1]} : vector<8x32xf32> to vector<8x8xf32>
    %cst_31 = arith.constant dense<0.000000e+00> : vector<8x8xf32>
    %56 = tpu.matmul %53, %54, %cst_31 {dimension_numbers = #tpu.dot_dimension_numbers<[1], [1], [0], [0], [0, 0, 1, 0], [], []>} : vector<8x8xf32>, vector<8x8xf32>, vector<8x8xf32> -> vector<8x8xf32>
    %cst_32 = arith.constant dense<0xFF800000> : vector<8xf32>
    %57 = vector.multi_reduction <maximumf>, %56, %cst_32 [1] : vector<8x8xf32> to vector<8xf32>
    %58 = vector.shape_cast %57 : vector<8xf32> to vector<8x1xf32>
    %59 = vector.broadcast %58 : vector<8x1xf32> to vector<8x8xf32>
    %60 = arith.subf %56, %59 : vector<8x8xf32>
    %61 = math.exp %60 : vector<8x8xf32>
    %cst_33 = arith.constant dense<0.000000e+00> : vector<8xf32>
    %62 = vector.multi_reduction <add>, %61, %cst_33 [1] : vector<8x8xf32> to vector<8xf32>
    %63 = vector.shape_cast %62 : vector<8xf32> to vector<8x1xf32>
    %64 = tpu.reciprocal %63 {approx = true} : vector<8x1xf32> -> vector<8x1xf32>
    %65 = vector.broadcast %64 : vector<8x1xf32> to vector<8x8xf32>
    %66 = arith.mulf %61, %65 : vector<8x8xf32>
    %cst_34 = arith.constant dense<0.000000e+00> : vector<8x8xf32>
    %67 = tpu.matmul %66, %55, %cst_34 {dimension_numbers = #tpu.dot_dimension_numbers<[1], [0], [0], [1], [0, 0, 1, 1], [], []>} : vector<8x8xf32>, vector<8x8xf32>, vector<8x8xf32> -> vector<8x8xf32>
    %68 = vector.extract_strided_slice %22 {offsets = [0, 24], sizes = [8, 8], strides = [1, 1]} : vector<8x32xf32> to vector<8x8xf32>
    %69 = vector.extract_strided_slice %15 {offsets = [0, 24], sizes = [8, 8], strides = [1, 1]} : vector<8x32xf32> to vector<8x8xf32>
    %70 = vector.extract_strided_slice %20 {offsets = [0, 24], sizes = [8, 8], strides = [1, 1]} : vector<8x32xf32> to vector<8x8xf32>
    %cst_35 = arith.constant dense<0.000000e+00> : vector<8x8xf32>
    %71 = tpu.matmul %68, %69, %cst_35 {dimension_numbers = #tpu.dot_dimension_numbers<[1], [1], [0], [0], [0, 0, 1, 0], [], []>} : vector<8x8xf32>, vector<8x8xf32>, vector<8x8xf32> -> vector<8x8xf32>
    %cst_36 = arith.constant dense<0xFF800000> : vector<8xf32>
    %72 = vector.multi_reduction <maximumf>, %71, %cst_36 [1] : vector<8x8xf32> to vector<8xf32>
    %73 = vector.shape_cast %72 : vector<8xf32> to vector<8x1xf32>
    %74 = vector.broadcast %73 : vector<8x1xf32> to vector<8x8xf32>
    %75 = arith.subf %71, %74 : vector<8x8xf32>
    %76 = math.exp %75 : vector<8x8xf32>
    %cst_37 = arith.constant dense<0.000000e+00> : vector<8xf32>
    %77 = vector.multi_reduction <add>, %76, %cst_37 [1] : vector<8x8xf32> to vector<8xf32>
    %78 = vector.shape_cast %77 : vector<8xf32> to vector<8x1xf32>
    %79 = tpu.reciprocal %78 {approx = true} : vector<8x1xf32> -> vector<8x1xf32>
    %80 = vector.broadcast %79 : vector<8x1xf32> to vector<8x8xf32>
    %81 = arith.mulf %76, %80 : vector<8x8xf32>
    %cst_38 = arith.constant dense<0.000000e+00> : vector<8x8xf32>
    %82 = tpu.matmul %81, %70, %cst_38 {dimension_numbers = #tpu.dot_dimension_numbers<[1], [0], [0], [1], [0, 0, 1, 1], [], []>} : vector<8x8xf32>, vector<8x8xf32>, vector<8x8xf32> -> vector<8x8xf32>
    %83 = tpu.concatenate %37, %52, %67, %82 in 1 : vector<8x8xf32>, vector<8x8xf32>, vector<8x8xf32>, vector<8x8xf32> -> vector<8x32xf32>
    %c0_39 = arith.constant 0 : index
    %c0_40 = arith.constant 0 : index
    %84 = vector.load %arg10[%c0_39, %c0_40] : memref<32x32xf32, #tpu.memory_space<vmem>>, vector<32x32xf32>
    %cst_41 = arith.constant dense<0.000000e+00> : vector<8x32xf32>
    %85 = tpu.matmul %83, %84, %cst_41 {dimension_numbers = #tpu.dot_dimension_numbers<[1], [0], [0], [1], [0, 0, 1, 1], [], []>} : vector<8x32xf32>, vector<32x32xf32>, vector<8x32xf32> -> vector<8x32xf32>
    %c0_42 = arith.constant 0 : index
    %c0_43 = arith.constant 0 : index
    %86 = vector.load %arg11[%c0_42, %c0_43] : memref<1x32xf32, #tpu.memory_space<vmem>>, vector<1x32xf32>
    %87 = vector.broadcast %86 : vector<1x32xf32> to vector<8x32xf32>
    %88 = arith.addf %85, %87 : vector<8x32xf32>
    %c0_44 = arith.constant 0 : index
    %c0_45 = arith.constant 0 : index
    %c0_46 = arith.constant 0 : index
    %89 = vector.load %arg12[%c0_44, %c0_45, %c0_46] : memref<1x8x32xf32, #tpu.memory_space<vmem>>, vector<1x8x32xf32>
    %90 = vector.shape_cast %89 : vector<1x8x32xf32> to vector<8x32xf32>
    %91 = vector.shape_cast %88 : vector<8x32xf32> to vector<1x8x32xf32>
    tpu.vector_store %arg12[%c0_44, %c0_45, %c0_46], %91 {strides = array<i32>} : memref<1x8x32xf32, #tpu.memory_space<vmem>>, vector<1x8x32xf32>,
    return
  }
  func.func @transform_0(%arg0: i32) -> (i32, i32, i32) {
    %c0_i32 = arith.constant 0 : i32
    %c0_i32_0 = arith.constant 0 : i32
    %c0_i32_1 = arith.constant 0 : i32
    return %arg0, %c0_i32, %c0_i32_0 : i32, i32, i32
  }
  func.func @transform_1(%arg0: i32) -> (i32, i32, i32) {
    %c0_i32 = arith.constant 0 : i32
    %c0_i32_0 = arith.constant 0 : i32
    %c0_i32_1 = arith.constant 0 : i32
    return %arg0, %c0_i32, %c0_i32_0 : i32, i32, i32
  }
  func.func @transform_2(%arg0: i32) -> (i32, i32, i32) {
    %c0_i32 = arith.constant 0 : i32
    %c0_i32_0 = arith.constant 0 : i32
    %c0_i32_1 = arith.constant 0 : i32
    return %arg0, %c0_i32, %c0_i32_0 : i32, i32, i32
  }
  func.func @transform_3(%arg0: i32) -> (i32, i32) {
    %c0_i32 = arith.constant 0 : i32
    %c0_i32_0 = arith.constant 0 : i32
    %c0_i32_1 = arith.constant 0 : i32
    return %c0_i32, %c0_i32_0 : i32, i32
  }
  func.func @transform_4(%arg0: i32) -> (i32, i32) {
    %c0_i32 = arith.constant 0 : i32
    %c0_i32_0 = arith.constant 0 : i32
    %c0_i32_1 = arith.constant 0 : i32
    return %c0_i32, %c0_i32_0 : i32, i32
  }
  func.func @transform_5(%arg0: i32) -> (i32, i32) {
    %c0_i32 = arith.constant 0 : i32
    %c0_i32_0 = arith.constant 0 : i32
    %c0_i32_1 = arith.constant 0 : i32
    return %c0_i32, %c0_i32_0 : i32, i32
  }
  func.func @transform_6(%arg0: i32) -> (i32, i32) {
    %c0_i32 = arith.constant 0 : i32
    %c0_i32_0 = arith.constant 0 : i32
    %c0_i32_1 = arith.constant 0 : i32
    return %c0_i32, %c0_i32_0 : i32, i32
  }
  func.func @transform_7(%arg0: i32) -> (i32, i32) {
    %c0_i32 = arith.constant 0 : i32
    %c0_i32_0 = arith.constant 0 : i32
    %c0_i32_1 = arith.constant 0 : i32
    return %c0_i32, %c0_i32_0 : i32, i32
  }
  func.func @transform_8(%arg0: i32) -> (i32, i32) {
    %c0_i32 = arith.constant 0 : i32
    %c0_i32_0 = arith.constant 0 : i32
    %c0_i32_1 = arith.constant 0 : i32
    return %c0_i32, %c0_i32_0 : i32, i32
  }
  func.func @transform_9(%arg0: i32) -> (i32, i32) {
    %c0_i32 = arith.constant 0 : i32
    %c0_i32_0 = arith.constant 0 : i32
    %c0_i32_1 = arith.constant 0 : i32
    return %c0_i32, %c0_i32_0 : i32, i32
  }
  func.func @transform_10(%arg0: i32) -> (i32, i32) {
    %c0_i32 = arith.constant 0 : i32
    %c0_i32_0 = arith.constant 0 : i32
    %c0_i32_1 = arith.constant 0 : i32
    return %c0_i32, %c0_i32_0 : i32, i32
  }
  func.func @transform_11(%arg0: i32) -> (i32, i32, i32) {
    %c0_i32 = arith.constant 0 : i32
    %c0_i32_0 = arith.constant 0 : i32
    %c0_i32_1 = arith.constant 0 : i32
    return %arg0, %c0_i32, %c0_i32_0 : i32, i32, i32
  }
}

</mosaic_0001>

<llo_original>
// kernel: tpu_custom_call.1
$region0: #{tpu_custom_call.1}
  #allocation0 [shape = 'u32[]', space=smem, size = 0x4, offset = 0x4, fixed_abs, tag = 'smem constant byte address 0x4 - core index']
  #allocation1 [shape = 'u32[144,128]{1,0:T(1,128)}', space=vmem, size = 0x12000, scoped, tag = 'internal scratch']
  %s0 = inlined_call_operand.hbm [shape: f32[2,8,32], index: 0, kind: input, shape index: {}]
  %s1 = inlined_call_operand.hbm [shape: f32[2,8,32], index: 1, kind: input, shape index: {}]
  %s2 = inlined_call_operand.hbm [shape: f32[2,8,32], index: 2, kind: input, shape index: {}]
  %s3 = inlined_call_operand.hbm [shape: f32[32,32], index: 3, kind: input, shape index: {}]
  %s4 = inlined_call_operand.vmem [shape: f32[1,32], index: 4, kind: input, shape index: {}]
  %s5 = inlined_call_operand.hbm [shape: f32[32,32], index: 5, kind: input, shape index: {}]
  %s6 = inlined_call_operand.vmem [shape: f32[1,32], index: 6, kind: input, shape index: {}]
  %s7 = inlined_call_operand.hbm [shape: f32[32,32], index: 7, kind: input, shape index: {}]
  %s8 = inlined_call_operand.vmem [shape: f32[1,32], index: 8, kind: input, shape index: {}]
  %s9 = inlined_call_operand.hbm [shape: f32[32,32], index: 9, kind: input, shape index: {}]
  %s10 = inlined_call_operand.vmem [shape: f32[1,32], index: 10, kind: input, shape index: {}]
  %s11 = inlined_call_operand.hbm [shape: f32[2,8,32], index: 11, kind: output, shape index: {}]
  %s12 = sld [smem:[#allocation0]]
  $region105: #{tpu_custom_call.1} parent=0
    _
  %s14 = ssub.s32 1, %s12
  %s15 = scalar_select 0, %s14, %s12
  $region1: #{tpu_custom_call.1} parent=0
    #allocation2 [shape = 'u8[8192]{0}', space=vmem, size = 0x2000, scoped, tag = 'input window, operand 0']
    #allocation3 [shape = 's32[2]{0}', space=sflag, size = 0x8, scoped, tag = 'scoped memory for tpu_custom_call.1']
    #allocation4 [shape = 's32[2]{0}', space=sflag, size = 0x8, scoped, tag = 'scoped memory for tpu_custom_call.1']
    #allocation5 [shape = 'u8[8192]{0}', space=vmem, size = 0x2000, scoped, tag = 'input window, operand 1']
    #allocation6 [shape = 's32[2]{0}', space=sflag, size = 0x8, scoped, tag = 'scoped memory for tpu_custom_call.1']
    #allocation7 [shape = 'u8[8192]{0}', space=vmem, size = 0x2000, scoped, tag = 'input window, operand 2']
    #allocation8 [shape = 'u8[16384]{0}', space=vmem, size = 0x4000, scoped, tag = 'input window, operand 3, single buffered']
    #allocation9 [shape = 's32[1]{0}', space=sflag, size = 0x4, scoped, tag = 'scoped memory for tpu_custom_call.1']
    #allocation10 [shape = 'u8[16384]{0}', space=vmem, size = 0x4000, scoped, tag = 'input window, operand 5, single buffered']
    #allocation11 [shape = 'u8[16384]{0}', space=vmem, size = 0x4000, scoped, tag = 'input window, operand 7, single buffered']
    #allocation12 [shape = 's32[1]{0}', space=sflag, size = 0x4, scoped, tag = 'scoped memory for tpu_custom_call.1']
    #allocation13 [shape = 'u8[16384]{0}', space=vmem, size = 0x4000, scoped, tag = 'input window, operand 9, single buffered']
    #allocation14 [shape = 'u8[8192]{0}', space=vmem, size = 0x2000, scoped, tag = 'output window, operand 0']
    %16 = vsyncpa [#allocation3], 0
    %s17 = scalar_lea.sflag [#allocation3], 1
    %18 = vsyncpa %s17, 0
    %19 = vsyncpa [#allocation6], 0
    %s20 = scalar_lea.sflag [#allocation6], 1
    %21 = vsyncpa %s20, 0
    %22 = vsyncpa [#allocation9], 0
    %23 = vsyncpa [#allocation12], 0
    %24 = vsyncpa [#allocation4], 0
    %s25 = scalar_lea.sflag [#allocation4], 1
    %26 = vsyncpa %s25, 0
    loop: start=0, step=1, limit=4
    $region2: #{tpu_custom_call.1} parent=1 // loop_pre_header
      _
    $region3: #{tpu_custom_call.1} parent=1 // loop_header
      %s28 = sphi 0, %s32
      %p29 = scmp.ge.s32.totalorder %s28, 4
      %s38 = sphi 0, %s40
      %s41 = sphi 0, %s38
      %s42 = sphi 0, %s41
      %s58 = sphi 0, %s42
      %s64 = sphi 0, %s66
      %s67 = sphi 0, %s64
      %s68 = sphi 0, %s67
      %s84 = sphi 0, %s68
      %s90 = sphi 0, %s92
      %s93 = sphi 0, %s90
      %s94 = sphi 0, %s93
      %s110 = sphi 0, %s94
      %s114 = sphi 0, %s114
      %s116 = sphi 0, %s114
      %s117 = sphi 0, %s116
      %s131 = sphi 0, %s117
      %s135 = sphi 0, %s135
      %s137 = sphi 0, %s135
      %s138 = sphi 0, %s137
      %s152 = sphi 0, %s138
      %s156 = sphi 0, %s156
      %s158 = sphi 0, %s156
      %s159 = sphi 0, %s158
      %s173 = sphi 0, %s159
      %s177 = sphi 0, %s177
      %s179 = sphi 0, %s177
      %s180 = sphi 0, %s179
      %s194 = sphi 0, %s180
      %s198 = sphi 0, %s198
      %s200 = sphi 0, %s198
      %s201 = sphi 0, %s200
      %s215 = sphi 0, %s201
      %s219 = sphi 0, %s219
      %s221 = sphi 0, %s219
      %s222 = sphi 0, %s221
      %s236 = sphi 0, %s222
      %s240 = sphi 0, %s240
      %s242 = sphi 0, %s240
      %s243 = sphi 0, %s242
      %s257 = sphi 0, %s243
      %s261 = sphi 0, %s261
      %s263 = sphi 0, %s261
      %s264 = sphi 0, %s263
      %s278 = sphi 0, %s264
      %s284 = sphi 0, %s286
      %s287 = sphi 0, %s284
      %s288 = sphi 0, %s287
      %s304 = sphi 0, %s288
    $region4: #{tpu_custom_call.1} parent=1 // loop_header_branch
      %31 = sbr.rel (%p29) target = $region8
    $region5: #{tpu_custom_call.1} parent=1 // loop_body
      %s33 = ssub.s32 %s28, 1
      %s34 = ssub.s32 %s28, 2
      %s35 = sadd.s32 %s28, 1
      %s36 = ssub.s32 %s28, %s35
      %p37 = scmp.eq.s32.totalorder %s36, 0
      %s39 = sadd.s32 %s38, 1
      %s40 = scalar_select %p37, %s38, %s39
      %p43 = pneg %p37
      %p44 = scmp.eq.s32.totalorder %s28, 1
      %p45 = por %p43, %p44
      %p46 = scmp.ne.s32.totalorder %s38, %s41
      %p47 = scmp.eq.s32.totalorder %s28, 0
      %p48 = por %p46, %p47
      %p49 = scmp.ne.s32.totalorder %s38, %s41
      %p50 = scmp.eq.s32.totalorder %s33, 1
      %p51 = por %p49, %p50
      %p52 = scmp.ne.s32.totalorder %s41, %s42
      %p53 = scmp.eq.s32.totalorder %s33, 0
      %p54 = por %p52, %p53
      %p55 = scmp.ne.s32.totalorder %s41, %s42
      %p56 = scmp.eq.s32.totalorder %s34, 1
      %p57 = por %p55, %p56
      %p59 = scmp.ne.s32.totalorder %s42, %s58
      %p60 = scmp.eq.s32.totalorder %s34, 0
      %p61 = por %p59, %p60
      %s62 = ssub.s32 %s28, %s35
      %p63 = scmp.eq.s32.totalorder %s62, 0
      %s65 = sadd.s32 %s64, 1
      %s66 = scalar_select %p63, %s64, %s65
      %p69 = pneg %p63
      %p70 = scmp.eq.s32.totalorder %s28, 1
      %p71 = por %p69, %p70
      %p72 = scmp.ne.s32.totalorder %s64, %s67
      %p73 = scmp.eq.s32.totalorder %s28, 0
      %p74 = por %p72, %p73
      %p75 = scmp.ne.s32.totalorder %s64, %s67
      %p76 = scmp.eq.s32.totalorder %s33, 1
      %p77 = por %p75, %p76
      %p78 = scmp.ne.s32.totalorder %s67, %s68
      %p79 = scmp.eq.s32.totalorder %s33, 0
      %p80 = por %p78, %p79
      %p81 = scmp.ne.s32.totalorder %s67, %s68
      %p82 = scmp.eq.s32.totalorder %s34, 1
      %p83 = por %p81, %p82
      %p85 = scmp.ne.s32.totalorder %s68, %s84
      %p86 = scmp.eq.s32.totalorder %s34, 0
      %p87 = por %p85, %p86
      %s88 = ssub.s32 %s28, %s35
      %p89 = scmp.eq.s32.totalorder %s88, 0
      %s91 = sadd.s32 %s90, 1
      %s92 = scalar_select %p89, %s90, %s91
      %p95 = pneg %p89
      %p96 = scmp.eq.s32.totalorder %s28, 1
      %p97 = por %p95, %p96
      %p98 = scmp.ne.s32.totalorder %s90, %s93
      %p99 = scmp.eq.s32.totalorder %s28, 0
      %p100 = por %p98, %p99
      %p101 = scmp.ne.s32.totalorder %s90, %s93
      %p102 = scmp.eq.s32.totalorder %s33, 1
      %p103 = por %p101, %p102
      %p104 = scmp.ne.s32.totalorder %s93, %s94
      %p105 = scmp.eq.s32.totalorder %s33, 0
      %p106 = por %p104, %p105
      %p107 = scmp.ne.s32.totalorder %s93, %s94
      %p108 = scmp.eq.s32.totalorder %s34, 1
      %p109 = por %p107, %p108
      %p111 = scmp.ne.s32.totalorder %s94, %s110
      %p112 = scmp.eq.s32.totalorder %s34, 0
      %p113 = por %p111, %p112
      %s115 = sadd.s32 %s114, 1
      %p118 = scmp.eq.s32.totalorder %s28, 1
      %p119 = scmp.ne.s32.totalorder %s114, %s116
      %p120 = scmp.eq.s32.totalorder %s28, 0
      %p121 = por %p119, %p120
      %p122 = scmp.ne.s32.totalorder %s114, %s116
      %p123 = scmp.eq.s32.totalorder %s33, 1
      %p124 = por %p122, %p123
      %p125 = scmp.ne.s32.totalorder %s116, %s117
      %p126 = scmp.eq.s32.totalorder %s33, 0
      %p127 = por %p125, %p126
      %p128 = scmp.ne.s32.totalorder %s116, %s117
      %p129 = scmp.eq.s32.totalorder %s34, 1
      %p130 = por %p128, %p129
      %p132 = scmp.ne.s32.totalorder %s117, %s131
      %p133 = scmp.eq.s32.totalorder %s34, 0
      %p134 = por %p132, %p133
      %s136 = sadd.s32 %s135, 1
      %p139 = scmp.eq.s32.totalorder %s28, 1
      %p140 = scmp.ne.s32.totalorder %s135, %s137
      %p141 = scmp.eq.s32.totalorder %s28, 0
      %p142 = por %p140, %p141
      %p143 = scmp.ne.s32.totalorder %s135, %s137
      %p144 = scmp.eq.s32.totalorder %s33, 1
      %p145 = por %p143, %p144
      %p146 = scmp.ne.s32.totalorder %s137, %s138
      %p147 = scmp.eq.s32.totalorder %s33, 0
      %p148 = por %p146, %p147
      %p149 = scmp.ne.s32.totalorder %s137, %s138
      %p150 = scmp.eq.s32.totalorder %s34, 1
      %p151 = por %p149, %p150
      %p153 = scmp.ne.s32.totalorder %s138, %s152
      %p154 = scmp.eq.s32.totalorder %s34, 0
      %p155 = por %p153, %p154
      %s157 = sadd.s32 %s156, 1
      %p160 = scmp.eq.s32.totalorder %s28, 1
      %p161 = scmp.ne.s32.totalorder %s156, %s158
      %p162 = scmp.eq.s32.totalorder %s28, 0
      %p163 = por %p161, %p162
      %p164 = scmp.ne.s32.totalorder %s156, %s158
      %p165 = scmp.eq.s32.totalorder %s33, 1
      %p166 = por %p164, %p165
      %p167 = scmp.ne.s32.totalorder %s158, %s159
      %p168 = scmp.eq.s32.totalorder %s33, 0
      %p169 = por %p167, %p168
      %p170 = scmp.ne.s32.totalorder %s158, %s159
      %p171 = scmp.eq.s32.totalorder %s34, 1
      %p172 = por %p170, %p171
      %p174 = scmp.ne.s32.totalorder %s159, %s173
      %p175 = scmp.eq.s32.totalorder %s34, 0
      %p176 = por %p174, %p175
      %s178 = sadd.s32 %s177, 1
      %p181 = scmp.eq.s32.totalorder %s28, 1
      %p182 = scmp.ne.s32.totalorder %s177, %s179
      %p183 = scmp.eq.s32.totalorder %s28, 0
      %p184 = por %p182, %p183
      %p185 = scmp.ne.s32.totalorder %s177, %s179
      %p186 = scmp.eq.s32.totalorder %s33, 1
      %p187 = por %p185, %p186
      %p188 = scmp.ne.s32.totalorder %s179, %s180
      %p189 = scmp.eq.s32.totalorder %s33, 0
      %p190 = por %p188, %p189
      %p191 = scmp.ne.s32.totalorder %s179, %s180
      %p192 = scmp.eq.s32.totalorder %s34, 1
      %p193 = por %p191, %p192
      %p195 = scmp.ne.s32.totalorder %s180, %s194
      %p196 = scmp.eq.s32.totalorder %s34, 0
      %p197 = por %p195, %p196
      %s199 = sadd.s32 %s198, 1
      %p202 = scmp.eq.s32.totalorder %s28, 1
      %p203 = scmp.ne.s32.totalorder %s198, %s200
      %p204 = scmp.eq.s32.totalorder %s28, 0
      %p205 = por %p203, %p204
      %p206 = scmp.ne.s32.totalorder %s198, %s200
      %p207 = scmp.eq.s32.totalorder %s33, 1
      %p208 = por %p206, %p207
      %p209 = scmp.ne.s32.totalorder %s200, %s201
      %p210 = scmp.eq.s32.totalorder %s33, 0
      %p211 = por %p209, %p210
      %p212 = scmp.ne.s32.totalorder %s200, %s201
      %p213 = scmp.eq.s32.totalorder %s34, 1
      %p214 = por %p212, %p213
      %p216 = scmp.ne.s32.totalorder %s201, %s215
      %p217 = scmp.eq.s32.totalorder %s34, 0
      %p218 = por %p216, %p217
      %s220 = sadd.s32 %s219, 1
      %p223 = scmp.eq.s32.totalorder %s28, 1
      %p224 = scmp.ne.s32.totalorder %s219, %s221
      %p225 = scmp.eq.s32.totalorder %s28, 0
      %p226 = por %p224, %p225
      %p227 = scmp.ne.s32.totalorder %s219, %s221
      %p228 = scmp.eq.s32.totalorder %s33, 1
      %p229 = por %p227, %p228
      %p230 = scmp.ne.s32.totalorder %s221, %s222
      %p231 = scmp.eq.s32.totalorder %s33, 0
      %p232 = por %p230, %p231
      %p233 = scmp.ne.s32.totalorder %s221, %s222
      %p234 = scmp.eq.s32.totalorder %s34, 1
      %p235 = por %p233, %p234
      %p237 = scmp.ne.s32.totalorder %s222, %s236
      %p238 = scmp.eq.s32.totalorder %s34, 0
      %p239 = por %p237, %p238
      %s241 = sadd.s32 %s240, 1
      %p244 = scmp.eq.s32.totalorder %s28, 1
      %p245 = scmp.ne.s32.totalorder %s240, %s242
      %p246 = scmp.eq.s32.totalorder %s28, 0
      %p247 = por %p245, %p246
      %p248 = scmp.ne.s32.totalorder %s240, %s242
      %p249 = scmp.eq.s32.totalorder %s33, 1
      %p250 = por %p248, %p249
      %p251 = scmp.ne.s32.totalorder %s242, %s243
      %p252 = scmp.eq.s32.totalorder %s33, 0
      %p253 = por %p251, %p252
      %p254 = scmp.ne.s32.totalorder %s242, %s243
      %p255 = scmp.eq.s32.totalorder %s34, 1
      %p256 = por %p254, %p255
      %p258 = scmp.ne.s32.totalorder %s243, %s257
      %p259 = scmp.eq.s32.totalorder %s34, 0
      %p260 = por %p258, %p259
      %s262 = sadd.s32 %s261, 1
      %p265 = scmp.eq.s32.totalorder %s28, 1
      %p266 = scmp.ne.s32.totalorder %s261, %s263
      %p267 = scmp.eq.s32.totalorder %s28, 0
      %p268 = por %p266, %p267
      %p269 = scmp.ne.s32.totalorder %s261, %s263
      %p270 = scmp.eq.s32.totalorder %s33, 1
      %p271 = por %p269, %p270
      %p272 = scmp.ne.s32.totalorder %s263, %s264
      %p273 = scmp.eq.s32.totalorder %s33, 0
      %p274 = por %p272, %p273
      %p275 = scmp.ne.s32.totalorder %s263, %s264
      %p276 = scmp.eq.s32.totalorder %s34, 1
      %p277 = por %p275, %p276
      %p279 = scmp.ne.s32.totalorder %s264, %s278
      %p280 = scmp.eq.s32.totalorder %s34, 0
      %p281 = por %p279, %p280
      %s282 = ssub.s32 %s28, %s35
      %p283 = scmp.eq.s32.totalorder %s282, 0
      %s285 = sadd.s32 %s284, 1
      %s286 = scalar_select %p283, %s284, %s285
      %p289 = pneg %p283
      %p290 = scmp.eq.s32.totalorder %s28, 1
      %p291 = por %p289, %p290
      %p292 = scmp.ne.s32.totalorder %s284, %s287
      %p293 = scmp.eq.s32.totalorder %s28, 0
      %p294 = por %p292, %p293
      %p295 = scmp.ne.s32.totalorder %s284, %s287
      %p296 = scmp.eq.s32.totalorder %s33, 1
      %p297 = por %p295, %p296
      %p298 = scmp.ne.s32.totalorder %s287, %s288
      %p299 = scmp.eq.s32.totalorder %s33, 0
      %p300 = por %p298, %p299
      %p301 = scmp.ne.s32.totalorder %s287, %s288
      %p302 = scmp.eq.s32.totalorder %s34, 1
      %p303 = por %p301, %p302
      %p305 = scmp.ne.s32.totalorder %s288, %s304
      %p306 = scmp.eq.s32.totalorder %s34, 0
      %p307 = por %p305, %p306
      %p308 = scmp.le.s32.totalorder 1, %s28
      %p309 = scmp.lt.s32.totalorder %s28, 3
      %p310 = pnand %p308, %p309
      %p311 = pneg %p310
      // Predicated region
      $region9: #{tpu_custom_call.1} parent=5 // pred_check
        _
      $region10: #{tpu_custom_call.1} parent=5 // pred_check_branch
        %313 = sbr.rel (%p310) target = $region12
      $region11: #{tpu_custom_call.1} parent=5 // pred_region
        %s314 = ssub.s32 %s28, 1
        // Predicated region
        $region13: #{tpu_custom_call.1} parent=11 // pred_check
          %p315 = pneg %p127
        $region14: #{tpu_custom_call.1} parent=11 // pred_check_branch
          %317 = sbr.rel (%p315) target = $region16
        $region15: #{tpu_custom_call.1} parent=11 // pred_region
          %s319 = ssub.s32 512, 512
          %320 = vsyncadd [#allocation9], %s319
          %s321 = sshll.u32 [#allocation8], 4
          %s322 = int_to_ptr.vmem [resolvable:$true] %s321
          %327 = dma.hbm_to_vmem [thread:$0]  %s3, 512, %s322, [#allocation9], 128, 128, 8
        $region16: #{tpu_custom_call.1} parent=11 // pred_fallthru
          _
        // Predicated region
        $region17: #{tpu_custom_call.1} parent=11 // pred_check
          %p328 = pneg %p148
        $region18: #{tpu_custom_call.1} parent=11 // pred_check_branch
          %330 = sbr.rel (%p328) target = $region20
        $region19: #{tpu_custom_call.1} parent=11 // pred_region
          _
        $region20: #{tpu_custom_call.1} parent=11 // pred_fallthru
          _
        // Predicated region
        $region21: #{tpu_custom_call.1} parent=11 // pred_check
          %p331 = pneg %p169
        $region22: #{tpu_custom_call.1} parent=11 // pred_check_branch
          %333 = sbr.rel (%p331) target = $region24
        $region23: #{tpu_custom_call.1} parent=11 // pred_region
          %s335 = ssub.s32 512, 512
          %336 = vsyncadd [#allocation9], %s335
          %s337 = sshll.u32 [#allocation10], 4
          %s338 = int_to_ptr.vmem [resolvable:$true] %s337
          %343 = dma.hbm_to_vmem [thread:$0]  %s5, 512, %s338, [#allocation9], 128, 128, 8
        $region24: #{tpu_custom_call.1} parent=11 // pred_fallthru
          _
        // Predicated region
        $region25: #{tpu_custom_call.1} parent=11 // pred_check
          %p344 = pneg %p190
        $region26: #{tpu_custom_call.1} parent=11 // pred_check_branch
          %346 = sbr.rel (%p344) target = $region28
        $region27: #{tpu_custom_call.1} parent=11 // pred_region
          _
        $region28: #{tpu_custom_call.1} parent=11 // pred_fallthru
          _
        // Predicated region
        $region29: #{tpu_custom_call.1} parent=11 // pred_check
          %p347 = pneg %p211
        $region30: #{tpu_custom_call.1} parent=11 // pred_check_branch
          %349 = sbr.rel (%p347) target = $region32
        $region31: #{tpu_custom_call.1} parent=11 // pred_region
          %s351 = ssub.s32 512, 512
          %352 = vsyncadd [#allocation12], %s351
          %s353 = sshll.u32 [#allocation11], 4
          %s354 = int_to_ptr.vmem [resolvable:$true] %s353
          %359 = dma.hbm_to_vmem [thread:$0]  %s7, 512, %s354, [#allocation12], 128, 128, 8
        $region32: #{tpu_custom_call.1} parent=11 // pred_fallthru
          _
        // Predicated region
        $region33: #{tpu_custom_call.1} parent=11 // pred_check
          %p360 = pneg %p232
        $region34: #{tpu_custom_call.1} parent=11 // pred_check_branch
          %362 = sbr.rel (%p360) target = $region36
        $region35: #{tpu_custom_call.1} parent=11 // pred_region
          _
        $region36: #{tpu_custom_call.1} parent=11 // pred_fallthru
          _
        // Predicated region
        $region37: #{tpu_custom_call.1} parent=11 // pred_check
          %p363 = pneg %p253
        $region38: #{tpu_custom_call.1} parent=11 // pred_check_branch
          %365 = sbr.rel (%p363) target = $region40
        $region39: #{tpu_custom_call.1} parent=11 // pred_region
          %s367 = ssub.s32 512, 512
          %368 = vsyncadd [#allocation12], %s367
          %s369 = sshll.u32 [#allocation13], 4
          %s370 = int_to_ptr.vmem [resolvable:$true] %s369
          %375 = dma.hbm_to_vmem [thread:$0]  %s9, 512, %s370, [#allocation12], 128, 128, 8
        $region40: #{tpu_custom_call.1} parent=11 // pred_fallthru
          _
        // Predicated region
        $region41: #{tpu_custom_call.1} parent=11 // pred_check
          %p376 = pneg %p274
        $region42: #{tpu_custom_call.1} parent=11 // pred_check_branch
          %378 = sbr.rel (%p376) target = $region44
        $region43: #{tpu_custom_call.1} parent=11 // pred_region
          _
        $region44: #{tpu_custom_call.1} parent=11 // pred_fallthru
          _
      $region12: #{tpu_custom_call.1} parent=5 // pred_fallthru
        _
      %p379 = scmp.lt.s32.totalorder %s28, 2
      // Predicated region
      $region45: #{tpu_custom_call.1} parent=5 // pred_check
        %p380 = pneg %p379
      $region46: #{tpu_custom_call.1} parent=5 // pred_check_branch
        %382 = sbr.rel (%p380) target = $region48
      $region47: #{tpu_custom_call.1} parent=5 // pred_region
        // Predicated region
        $region49: #{tpu_custom_call.1} parent=47 // pred_check
          %p383 = pneg %p48
        $region50: #{tpu_custom_call.1} parent=47 // pred_check_branch
          %385 = sbr.rel (%p383) target = $region52
        $region51: #{tpu_custom_call.1} parent=47 // pred_region
          %s386 = sand.u32 %s38, 1
          %s387 = scalar_lea.sflag [#allocation3], %s386
          %s388 = sand.u32 %s38, 1
          %s389 = smul.addr %s388, 8
          %s390 = scalar_lea.vmem [#allocation2], %s389
          %s392 = ssub.s32 128, 128
          %393 = vsyncadd %s387, %s392
          %s394 = smul.addr %s28, 128
          %s395 = scalar_lea.hbm %s0, %s394
          %s397 = sshll.u32 %s390, 4
          %s398 = int_to_ptr.vmem [resolvable:$true] %s397
          %400 = dma.hbm_to_vmem [thread:$0]  %s395, 128, %s398, %s387
        $region52: #{tpu_custom_call.1} parent=47 // pred_fallthru
          _
        // Predicated region
        $region53: #{tpu_custom_call.1} parent=47 // pred_check
          %p401 = pneg %p74
        $region54: #{tpu_custom_call.1} parent=47 // pred_check_branch
          %403 = sbr.rel (%p401) target = $region56
        $region55: #{tpu_custom_call.1} parent=47 // pred_region
          %s404 = sand.u32 %s28, 1
          %s405 = scalar_lea.sflag [#allocation6], %s404
          %s406 = sand.u32 %s64, 1
          %s407 = smul.addr %s406, 8
          %s408 = scalar_lea.vmem [#allocation5], %s407
          %s410 = ssub.s32 128, 128
          %411 = vsyncadd %s405, %s410
          %s412 = smul.addr %s28, 128
          %s413 = scalar_lea.hbm %s1, %s412
          %s415 = sshll.u32 %s408, 4
          %s416 = int_to_ptr.vmem [resolvable:$true] %s415
          %418 = dma.hbm_to_vmem [thread:$0]  %s413, 128, %s416, %s405
        $region56: #{tpu_custom_call.1} parent=47 // pred_fallthru
          _
        // Predicated region
        $region57: #{tpu_custom_call.1} parent=47 // pred_check
          %p419 = pneg %p100
        $region58: #{tpu_custom_call.1} parent=47 // pred_check_branch
          %421 = sbr.rel (%p419) target = $region60
        $region59: #{tpu_custom_call.1} parent=47 // pred_region
          %s422 = sand.u32 %s28, 1
          %s423 = scalar_lea.sflag [#allocation6], %s422
          %s424 = sand.u32 %s90, 1
          %s425 = smul.addr %s424, 8
          %s426 = scalar_lea.vmem [#allocation7], %s425
          %s428 = ssub.s32 128, 128
          %429 = vsyncadd %s423, %s428
          %s430 = smul.addr %s28, 128
          %s431 = scalar_lea.hbm %s2, %s430
          %s433 = sshll.u32 %s426, 4
          %s434 = int_to_ptr.vmem [resolvable:$true] %s433
          %436 = dma.hbm_to_vmem [thread:$0]  %s431, 128, %s434, %s423
        $region60: #{tpu_custom_call.1} parent=47 // pred_fallthru
          _
      $region48: #{tpu_custom_call.1} parent=5 // pred_fallthru
        _
      %p437 = scmp.le.s32.totalorder 1, %s28
      %p438 = scmp.lt.s32.totalorder %s28, 3
      %p439 = pnand %p437, %p438
      %p440 = pneg %p439
      // Predicated region
      $region61: #{tpu_custom_call.1} parent=5 // pred_check
        _
      $region62: #{tpu_custom_call.1} parent=5 // pred_check_branch
        %442 = sbr.rel (%p439) target = $region64
      $region63: #{tpu_custom_call.1} parent=5 // pred_region
        %s443 = ssub.s32 %s28, 1
        %s444 = sand.u32 %s41, 1
        %s445 = scalar_lea.sflag [#allocation3], %s444
        %s446 = sand.u32 %s41, 1
        %s447 = smul.addr %s446, 8
        %s448 = scalar_lea.vmem [#allocation2], %s447
        // Predicated region
        $region65: #{tpu_custom_call.1} parent=63 // pred_check
          %p449 = pneg %p54
        $region66: #{tpu_custom_call.1} parent=63 // pred_check_branch
          %451 = sbr.rel (%p449) target = $region68
        $region67: #{tpu_custom_call.1} parent=63 // pred_region
          %452 = dma.done %s445, 128
        $region68: #{tpu_custom_call.1} parent=63 // pred_fallthru
          _
        %s453 = sand.u32 %s33, 1
        %s454 = scalar_lea.sflag [#allocation6], %s453
        %s455 = sand.u32 %s67, 1
        %s456 = smul.addr %s455, 8
        %s457 = scalar_lea.vmem [#allocation5], %s456
        // Predicated region
        $region69: #{tpu_custom_call.1} parent=63 // pred_check
          %p458 = pneg %p80
        $region70: #{tpu_custom_call.1} parent=63 // pred_check_branch
          %460 = sbr.rel (%p458) target = $region72
        $region71: #{tpu_custom_call.1} parent=63 // pred_region
          %461 = dma.done %s454, 128
        $region72: #{tpu_custom_call.1} parent=63 // pred_fallthru
          _
        %s462 = sand.u32 %s33, 1
        %s463 = scalar_lea.sflag [#allocation6], %s462
        %s464 = sand.u32 %s93, 1
        %s465 = smul.addr %s464, 8
        %s466 = scalar_lea.vmem [#allocation7], %s465
        // Predicated region
        $region73: #{tpu_custom_call.1} parent=63 // pred_check
          %p467 = pneg %p106
        $region74: #{tpu_custom_call.1} parent=63 // pred_check_branch
          %469 = sbr.rel (%p467) target = $region76
        $region75: #{tpu_custom_call.1} parent=63 // pred_region
          %470 = dma.done %s463, 128
        $region76: #{tpu_custom_call.1} parent=63 // pred_fallthru
          _
        // Predicated region
        $region77: #{tpu_custom_call.1} parent=63 // pred_check
          %p471 = pneg %p127
        $region78: #{tpu_custom_call.1} parent=63 // pred_check_branch
          %473 = sbr.rel (%p471) target = $region80
        $region79: #{tpu_custom_call.1} parent=63 // pred_region
          %474 = dma.done [#allocation9], 512
        $region80: #{tpu_custom_call.1} parent=63 // pred_fallthru
          _
        // Predicated region
        $region81: #{tpu_custom_call.1} parent=63 // pred_check
          %p475 = pneg %p169
        $region82: #{tpu_custom_call.1} parent=63 // pred_check_branch
          %477 = sbr.rel (%p475) target = $region84
        $region83: #{tpu_custom_call.1} parent=63 // pred_region
          %478 = dma.done [#allocation9], 512
        $region84: #{tpu_custom_call.1} parent=63 // pred_fallthru
          _
        // Predicated region
        $region85: #{tpu_custom_call.1} parent=63 // pred_check
          %p479 = pneg %p211
        $region86: #{tpu_custom_call.1} parent=63 // pred_check_branch
          %481 = sbr.rel (%p479) target = $region88
        $region87: #{tpu_custom_call.1} parent=63 // pred_region
          %482 = dma.done [#allocation12], 512
        $region88: #{tpu_custom_call.1} parent=63 // pred_fallthru
          _
        // Predicated region
        $region89: #{tpu_custom_call.1} parent=63 // pred_check
          %p483 = pneg %p253
        $region90: #{tpu_custom_call.1} parent=63 // pred_check_branch
          %485 = sbr.rel (%p483) target = $region92
        $region91: #{tpu_custom_call.1} parent=63 // pred_region
          %486 = dma.done [#allocation12], 512
        $region92: #{tpu_custom_call.1} parent=63 // pred_fallthru
          _
        %s487 = sand.u32 %s41, 1
        %s488 = scalar_lea.sflag [#allocation3], %s487
        %s489 = sand.u32 %s41, 1
        %s490 = smul.addr %s489, 8
        %s491 = scalar_lea.vmem [#allocation2], %s490
        %p492 = pneg %p54
        %p493 = pneg %p51
        %s494 = sand.u32 %s33, 1
        %s495 = scalar_lea.sflag [#allocation6], %s494
        %s496 = sand.u32 %s67, 1
        %s497 = smul.addr %s496, 8
        %s498 = scalar_lea.vmem [#allocation5], %s497
        %p499 = pneg %p80
        %p500 = pneg %p77
        %s501 = sand.u32 %s33, 1
        %s502 = scalar_lea.sflag [#allocation6], %s501
        %s503 = sand.u32 %s93, 1
        %s504 = smul.addr %s503, 8
        %s505 = scalar_lea.vmem [#allocation7], %s504
        %p506 = pneg %p106
        %p507 = pneg %p103
        %p508 = pneg %p127
        %p509 = pneg %p124
        %p510 = pneg %p148
        %p511 = pneg %p145
        %p512 = pneg %p169
        %p513 = pneg %p166
        %p514 = pneg %p190
        %p515 = pneg %p187
        %p516 = pneg %p211
        %p517 = pneg %p208
        %p518 = pneg %p232
        %p519 = pneg %p229
        %p520 = pneg %p253
        %p521 = pneg %p250
        %p522 = pneg %p274
        %p523 = pneg %p271
        %p524 = pneg %p300
        %p525 = pneg %p297
        %s526 = sand.u32 %s287, 1
        %s527 = scalar_lea.sflag [#allocation4], %s526
        %s528 = sand.u32 %s287, 1
        %s529 = smul.addr %s528, 8
        %s530 = scalar_lea.vmem [#allocation14], %s529
        %v531 = vld [vmem:[%s448] sm:$0xff]
        %v532 = vld [vmem:[%s457] sm:$0xff]
        %v533 = vld [vmem:[%s466] sm:$0xff]
        %v534 = vld [vmem:[#allocation8] sm:$0xff]
        %v535 = vld [vmem:[#allocation8 + $0x8] sm:$0xff]
        %v536 = vld [vmem:[#allocation8 + $0x10] sm:$0xff]
        %v537 = vld [vmem:[#allocation8 + $0x18] sm:$0xff]
        %v538 = vld [vmem:[%s4] sm:$0x1]
        %v540 = vlaneseq
        %v541 = vshrl.u32 %v540, 7
        %v542 = vsub.s32 0, %v541
        %v543 = vrot.slane %v538, %v542
        %vm545 = vcmask 261120
        %v547 = vsel %vm545, %v531, 0
        %549 = vmatprep.subr.mxu0 0.0
        %550 = vmatpush1.msra.mxu0 0.0
        %551 = vmatprep.subr.mxu0 0.0
        %552 = vmatpush1.msra.mxu0 0.0
        %553 = vmatprep.subr.mxu0 0.0
        %554 = vmatpush1.msra.mxu0 0.0
        %555 = vmatprep.subr.mxu0 0.0
        %556 = vmatpush1.msra.mxu0 0.0
        %557 = vmatprep.subr.mxu0 0.0
        %558 = vmatpush1.msra.mxu0 0.0
        %559 = vmatprep.subr.mxu0 0.0
        %560 = vmatpush1.msra.mxu0 0.0
        %561 = vmatprep.subr.mxu0 0.0
        %562 = vmatpush1.msra.mxu0 0.0
        %563 = vmatprep.subr.mxu0 0.0
        %564 = vmatpush1.msra.mxu0 0.0
        %565 = vmatprep.subr.mxu0 0.0
        %566 = vmatpush1.msra.mxu0 0.0
        %567 = vmatprep.subr.mxu0 0.0
        %568 = vmatpush1.msra.mxu0 0.0
        %569 = vmatprep.subr.mxu0 0.0
        %570 = vmatpush1.msra.mxu0 0.0
        %571 = vmatprep.subr.mxu0 0.0
        %572 = vmatpush1.msra.mxu0 0.0
        %573 = vmatprep.subr.mxu0 0.0
        %574 = vmatpush1.msra.mxu0 %v537
        %575 = vmatprep.subr.mxu0 0.0
        %576 = vmatpush1.msra.mxu0 %v536
        %577 = vmatprep.subr.mxu0 0.0
        %578 = vmatpush1.msra.mxu0 %v535
        %579 = vmatprep.subr.mxu0 0.0
        %580 = vmatpush1.msra.mxu0 %v534
        %581 = vmatprep.subr.mxu0 0.0
        %582 = vmatpush2.msra.mxu0 0.0
        %583 = vmatprep.subr.mxu0 0.0
        %584 = vmatpush2.msra.mxu0 0.0
        %585 = vmatprep.subr.mxu0 0.0
        %586 = vmatpush2.msra.mxu0 0.0
        %587 = vmatprep.subr.mxu0 0.0
        %588 = vmatpush2.msra.mxu0 0.0
        %589 = vmatprep.subr.mxu0 0.0
        %590 = vmatpush2.msra.mxu0 0.0
        %591 = vmatprep.subr.mxu0 0.0
        %592 = vmatpush2.msra.mxu0 0.0
        %593 = vmatprep.subr.mxu0 0.0
        %594 = vmatpush2.msra.mxu0 0.0
        %595 = vmatprep.subr.mxu0 0.0
        %596 = vmatpush2.msra.mxu0 0.0
        %597 = vmatprep.subr.mxu0 0.0
        %598 = vmatpush2.msra.mxu0 0.0
        %599 = vmatprep.subr.mxu0 0.0
        %600 = vmatpush2.msra.mxu0 0.0
        %601 = vmatprep.subr.mxu0 0.0
        %602 = vmatpush2.msra.mxu0 0.0
        %603 = vmatprep.subr.mxu0 0.0
        %604 = vmatpush2.msra.mxu0 0.0
        %605 = vmatprep.subr.mxu0 0.0
        %606 = vmatpush2.msra.mxu0 0.0
        %607 = vmatprep.subr.mxu0 0.0
        %608 = vmatpush2.msra.mxu0 0.0
        %609 = vmatprep.subr.mxu0 0.0
        %610 = vmatpush2.msra.mxu0 0.0
        %611 = vmatprep.subr.mxu0 0.0
        %612 = vmatpush2.msra.mxu0 0.0
        %613 = vmatprep.mubr.f32.mxu0 0.0
        %614 = vmatmul.mubr.f32.gmra.mxu0 %v547
        %v615 = vpop.f32.mrf.mxu0
        %v616 = vadd.f32 %v543, %v615
        %v617 = vpop.f32.mrf.mxu0
        %618 = vdwg.mxu0
        %v619 = vld [vmem:[#allocation10] sm:$0xff]
        %v620 = vld [vmem:[#allocation10 + $0x8] sm:$0xff]
        %v621 = vld [vmem:[#allocation10 + $0x10] sm:$0xff]
        %v622 = vld [vmem:[#allocation10 + $0x18] sm:$0xff]
        %v623 = vld [vmem:[%s6] sm:$0x1]
        %v625 = vlaneseq
        %v626 = vshrl.u32 %v625, 7
        %v627 = vsub.s32 0, %v626
        %v628 = vrot.slane %v623, %v627
        %v631 = vsel %vm545, %v532, 0
        %633 = vmatprep.subr.mxu0 0.0
        %634 = vmatpush1.msra.mxu0 0.0
        %635 = vmatprep.subr.mxu0 0.0
        %636 = vmatpush1.msra.mxu0 0.0
        %637 = vmatprep.subr.mxu0 0.0
        %638 = vmatpush1.msra.mxu0 0.0
        %639 = vmatprep.subr.mxu0 0.0
        %640 = vmatpush1.msra.mxu0 0.0
        %641 = vmatprep.subr.mxu0 0.0
        %642 = vmatpush1.msra.mxu0 0.0
        %643 = vmatprep.subr.mxu0 0.0
        %644 = vmatpush1.msra.mxu0 0.0
        %645 = vmatprep.subr.mxu0 0.0
        %646 = vmatpush1.msra.mxu0 0.0
        %647 = vmatprep.subr.mxu0 0.0
        %648 = vmatpush1.msra.mxu0 0.0
        %649 = vmatprep.subr.mxu0 0.0
        %650 = vmatpush1.msra.mxu0 0.0
        %651 = vmatprep.subr.mxu0 0.0
        %652 = vmatpush1.msra.mxu0 0.0
        %653 = vmatprep.subr.mxu0 0.0
        %654 = vmatpush1.msra.mxu0 0.0
        %655 = vmatprep.subr.mxu0 0.0
        %656 = vmatpush1.msra.mxu0 0.0
        %657 = vmatprep.subr.mxu0 0.0
        %658 = vmatpush1.msra.mxu0 %v622
        %659 = vmatprep.subr.mxu0 0.0
        %660 = vmatpush1.msra.mxu0 %v621
        %661 = vmatprep.subr.mxu0 0.0
        %662 = vmatpush1.msra.mxu0 %v620
        %663 = vmatprep.subr.mxu0 0.0
        %664 = vmatpush1.msra.mxu0 %v619
        %665 = vmatprep.subr.mxu0 0.0
        %666 = vmatpush2.msra.mxu0 0.0
        %667 = vmatprep.subr.mxu0 0.0
        %668 = vmatpush2.msra.mxu0 0.0
        %669 = vmatprep.subr.mxu0 0.0
        %670 = vmatpush2.msra.mxu0 0.0
        %671 = vmatprep.subr.mxu0 0.0
        %672 = vmatpush2.msra.mxu0 0.0
        %673 = vmatprep.subr.mxu0 0.0
        %674 = vmatpush2.msra.mxu0 0.0
        %675 = vmatprep.subr.mxu0 0.0
        %676 = vmatpush2.msra.mxu0 0.0
        %677 = vmatprep.subr.mxu0 0.0
        %678 = vmatpush2.msra.mxu0 0.0
        %679 = vmatprep.subr.mxu0 0.0
        %680 = vmatpush2.msra.mxu0 0.0
        %681 = vmatprep.subr.mxu0 0.0
        %682 = vmatpush2.msra.mxu0 0.0
        %683 = vmatprep.subr.mxu0 0.0
        %684 = vmatpush2.msra.mxu0 0.0
        %685 = vmatprep.subr.mxu0 0.0
        %686 = vmatpush2.msra.mxu0 0.0
        %687 = vmatprep.subr.mxu0 0.0
        %688 = vmatpush2.msra.mxu0 0.0
        %689 = vmatprep.subr.mxu0 0.0
        %690 = vmatpush2.msra.mxu0 0.0
        %691 = vmatprep.subr.mxu0 0.0
        %692 = vmatpush2.msra.mxu0 0.0
        %693 = vmatprep.subr.mxu0 0.0
        %694 = vmatpush2.msra.mxu0 0.0
        %695 = vmatprep.subr.mxu0 0.0
        %696 = vmatpush2.msra.mxu0 0.0
        %697 = vmatprep.mubr.f32.mxu0 0.0
        %698 = vmatmul.mubr.f32.gmra.mxu0 %v631
        %v699 = vpop.f32.mrf.mxu0
        %v700 = vadd.f32 %v628, %v699
        %v701 = vpop.f32.mrf.mxu0
        %702 = vdwg.mxu0
        %v703 = vld [vmem:[#allocation11] sm:$0xff]
        %v704 = vld [vmem:[#allocation11 + $0x8] sm:$0xff]
        %v705 = vld [vmem:[#allocation11 + $0x10] sm:$0xff]
        %v706 = vld [vmem:[#allocation11 + $0x18] sm:$0xff]
        %v707 = vld [vmem:[%s8] sm:$0x1]
        %v709 = vlaneseq
        %v710 = vshrl.u32 %v709, 7
        %v711 = vsub.s32 0, %v710
        %v712 = vrot.slane %v707, %v711
        %v715 = vsel %vm545, %v533, 0
        %717 = vmatprep.subr.mxu0 0.0
        %718 = vmatpush1.msra.mxu0 0.0
        %719 = vmatprep.subr.mxu0 0.0
        %720 = vmatpush1.msra.mxu0 0.0
        %721 = vmatprep.subr.mxu0 0.0
        %722 = vmatpush1.msra.mxu0 0.0
        %723 = vmatprep.subr.mxu0 0.0
        %724 = vmatpush1.msra.mxu0 0.0
        %725 = vmatprep.subr.mxu0 0.0
        %726 = vmatpush1.msra.mxu0 0.0
        %727 = vmatprep.subr.mxu0 0.0
        %728 = vmatpush1.msra.mxu0 0.0
        %729 = vmatprep.subr.mxu0 0.0
        %730 = vmatpush1.msra.mxu0 0.0
        %731 = vmatprep.subr.mxu0 0.0
        %732 = vmatpush1.msra.mxu0 0.0
        %733 = vmatprep.subr.mxu0 0.0
        %734 = vmatpush1.msra.mxu0 0.0
        %735 = vmatprep.subr.mxu0 0.0
        %736 = vmatpush1.msra.mxu0 0.0
        %737 = vmatprep.subr.mxu0 0.0
        %738 = vmatpush1.msra.mxu0 0.0
        %739 = vmatprep.subr.mxu0 0.0
        %740 = vmatpush1.msra.mxu0 0.0
        %741 = vmatprep.subr.mxu0 0.0
        %742 = vmatpush1.msra.mxu0 %v706
        %743 = vmatprep.subr.mxu0 0.0
        %744 = vmatpush1.msra.mxu0 %v705
        %745 = vmatprep.subr.mxu0 0.0
        %746 = vmatpush1.msra.mxu0 %v704
        %747 = vmatprep.subr.mxu0 0.0
        %748 = vmatpush1.msra.mxu0 %v703
        %749 = vmatprep.subr.mxu0 0.0
        %750 = vmatpush2.msra.mxu0 0.0
        %751 = vmatprep.subr.mxu0 0.0
        %752 = vmatpush2.msra.mxu0 0.0
        %753 = vmatprep.subr.mxu0 0.0
        %754 = vmatpush2.msra.mxu0 0.0
        %755 = vmatprep.subr.mxu0 0.0
        %756 = vmatpush2.msra.mxu0 0.0
        %757 = vmatprep.subr.mxu0 0.0
        %758 = vmatpush2.msra.mxu0 0.0
        %759 = vmatprep.subr.mxu0 0.0
        %760 = vmatpush2.msra.mxu0 0.0
        %761 = vmatprep.subr.mxu0 0.0
        %762 = vmatpush2.msra.mxu0 0.0
        %763 = vmatprep.subr.mxu0 0.0
        %764 = vmatpush2.msra.mxu0 0.0
        %765 = vmatprep.subr.mxu0 0.0
        %766 = vmatpush2.msra.mxu0 0.0
        %767 = vmatprep.subr.mxu0 0.0
        %768 = vmatpush2.msra.mxu0 0.0
        %769 = vmatprep.subr.mxu0 0.0
        %770 = vmatpush2.msra.mxu0 0.0
        %771 = vmatprep.subr.mxu0 0.0
        %772 = vmatpush2.msra.mxu0 0.0
        %773 = vmatprep.subr.mxu0 0.0
        %774 = vmatpush2.msra.mxu0 0.0
        %775 = vmatprep.subr.mxu0 0.0
        %776 = vmatpush2.msra.mxu0 0.0
        %777 = vmatprep.subr.mxu0 0.0
        %778 = vmatpush2.msra.mxu0 0.0
        %779 = vmatprep.subr.mxu0 0.0
        %780 = vmatpush2.msra.mxu0 0.0
        %781 = vmatprep.mubr.f32.mxu0 0.0
        %782 = vmatmul.mubr.f32.gmra.mxu0 %v715
        %v783 = vpop.f32.mrf.mxu0
        %v784 = vadd.f32 %v712, %v783
        %v785 = vpop.f32.mrf.mxu0
        %786 = vdwg.mxu0
        %v787 = vmul.f32 %v616, 0.35355338
        %vm788 = vcmask 64512
        %v790 = vsel %vm788, %v787, 0
        %v793 = vsel %vm788, %v700, 0
        %795 = vmatprep.subr.mxu0 0.0
        %796 = vmatpush1.xpose.msra.mxu0 0.0
        %797 = vmatprep.subr.mxu0 0.0
        %798 = vmatpush1.xpose.msra.mxu0 0.0
        %799 = vmatprep.subr.mxu0 0.0
        %800 = vmatpush1.xpose.msra.mxu0 0.0
        %801 = vmatprep.subr.mxu0 0.0
        %802 = vmatpush1.xpose.msra.mxu0 0.0
        %803 = vmatprep.subr.mxu0 0.0
        %804 = vmatpush1.xpose.msra.mxu0 0.0
        %805 = vmatprep.subr.mxu0 0.0
        %806 = vmatpush1.xpose.msra.mxu0 0.0
        %807 = vmatprep.subr.mxu0 0.0
        %808 = vmatpush1.xpose.msra.mxu0 0.0
        %809 = vmatprep.subr.mxu0 0.0
        %810 = vmatpush1.xpose.msra.mxu0 0.0
        %811 = vmatprep.subr.mxu0 0.0
        %812 = vmatpush1.xpose.msra.mxu0 0.0
        %813 = vmatprep.subr.mxu0 0.0
        %814 = vmatpush1.xpose.msra.mxu0 0.0
        %815 = vmatprep.subr.mxu0 0.0
        %816 = vmatpush1.xpose.msra.mxu0 0.0
        %817 = vmatprep.subr.mxu0 0.0
        %818 = vmatpush1.xpose.msra.mxu0 0.0
        %819 = vmatprep.subr.mxu0 0.0
        %820 = vmatpush1.xpose.msra.mxu0 0.0
        %821 = vmatprep.subr.mxu0 0.0
        %822 = vmatpush1.xpose.msra.mxu0 0.0
        %823 = vmatprep.subr.mxu0 0.0
        %824 = vmatpush1.xpose.msra.mxu0 0.0
        %825 = vmatprep.subr.mxu0 0.0
        %826 = vmatpush1.xpose.msra.mxu0 %v793
        %827 = vmatprep.subr.mxu0 0.0
        %828 = vmatpush2.xpose.msra.mxu0 0.0
        %829 = vmatprep.subr.mxu0 0.0
        %830 = vmatpush2.xpose.msra.mxu0 0.0
        %831 = vmatprep.subr.mxu0 0.0
        %832 = vmatpush2.xpose.msra.mxu0 0.0
        %833 = vmatprep.subr.mxu0 0.0
        %834 = vmatpush2.xpose.msra.mxu0 0.0
        %835 = vmatprep.subr.mxu0 0.0
        %836 = vmatpush2.xpose.msra.mxu0 0.0
        %837 = vmatprep.subr.mxu0 0.0
        %838 = vmatpush2.xpose.msra.mxu0 0.0
        %839 = vmatprep.subr.mxu0 0.0
        %840 = vmatpush2.xpose.msra.mxu0 0.0
        %841 = vmatprep.subr.mxu0 0.0
        %842 = vmatpush2.xpose.msra.mxu0 0.0
        %843 = vmatprep.subr.mxu0 0.0
        %844 = vmatpush2.xpose.msra.mxu0 0.0
        %845 = vmatprep.subr.mxu0 0.0
        %846 = vmatpush2.xpose.msra.mxu0 0.0
        %847 = vmatprep.subr.mxu0 0.0
        %848 = vmatpush2.xpose.msra.mxu0 0.0
        %849 = vmatprep.subr.mxu0 0.0
        %850 = vmatpush2.xpose.msra.mxu0 0.0
        %851 = vmatprep.subr.mxu0 0.0
        %852 = vmatpush2.xpose.msra.mxu0 0.0
        %853 = vmatprep.subr.mxu0 0.0
        %854 = vmatpush2.xpose.msra.mxu0 0.0
        %855 = vmatprep.subr.mxu0 0.0
        %856 = vmatpush2.xpose.msra.mxu0 0.0
        %857 = vmatprep.subr.mxu0 0.0
        %858 = vmatpush2.xpose.msra.mxu0 0.0
        %859 = vmatprep.mubr.f32.mxu0 0.0
        %860 = vmatmul.mubr.f32.gmra.mxu0 %v790
        %v861 = vpop.f32.mrf.mxu0
        %v862 = vadd.f32 0.0, %v861
        %v863 = vpop.f32.mrf.mxu0
        %864 = vdwg.mxu0
        %v865 = vsel %vm788, %v862, -inf
        %866 = vmax.xlane.f32.xlu0 %v865
        %v867 = vpop.xlane.xlu0 %866
        %v868 = vsub.f32 %v862, %v867
        %v869 = vmul.f32 %v868, 1.442695
        %v870 = vpow.pop %v869
        %v871 = vsel %vm788, %v870, 0.0
        %872 = vadd.xlane.f32.xlu0 %v871
        %v873 = vpop.xlane.xlu0 %872
        %v874 = vrcp.pop %v873
        %v875 = vmul.f32 %v870, %v874
        %v877 = vsel %vm788, %v875, 0
        %879 = vmatprep.subr.mxu0 0.0
        %880 = vmatpush1.msra.mxu0 0.0
        %881 = vmatprep.subr.mxu0 0.0
        %882 = vmatpush1.msra.mxu0 0.0
        %883 = vmatprep.subr.mxu0 0.0
        %884 = vmatpush1.msra.mxu0 0.0
        %885 = vmatprep.subr.mxu0 0.0
        %886 = vmatpush1.msra.mxu0 0.0
        %887 = vmatprep.subr.mxu0 0.0
        %888 = vmatpush1.msra.mxu0 0.0
        %889 = vmatprep.subr.mxu0 0.0
        %890 = vmatpush1.msra.mxu0 0.0
        %891 = vmatprep.subr.mxu0 0.0
        %892 = vmatpush1.msra.mxu0 0.0
        %893 = vmatprep.subr.mxu0 0.0
        %894 = vmatpush1.msra.mxu0 0.0
        %895 = vmatprep.subr.mxu0 0.0
        %896 = vmatpush1.msra.mxu0 0.0
        %897 = vmatprep.subr.mxu0 0.0
        %898 = vmatpush1.msra.mxu0 0.0
        %899 = vmatprep.subr.mxu0 0.0
        %900 = vmatpush1.msra.mxu0 0.0
        %901 = vmatprep.subr.mxu0 0.0
        %902 = vmatpush1.msra.mxu0 0.0
        %903 = vmatprep.subr.mxu0 0.0
        %904 = vmatpush1.msra.mxu0 0.0
        %905 = vmatprep.subr.mxu0 0.0
        %906 = vmatpush1.msra.mxu0 0.0
        %907 = vmatprep.subr.mxu0 0.0
        %908 = vmatpush1.msra.mxu0 0.0
        %909 = vmatprep.subr.mxu0 0.0
        %910 = vmatpush1.msra.mxu0 %v784
        %911 = vmatprep.subr.mxu0 0.0
        %912 = vmatpush2.msra.mxu0 0.0
        %913 = vmatprep.subr.mxu0 0.0
        %914 = vmatpush2.msra.mxu0 0.0
        %915 = vmatprep.subr.mxu0 0.0
        %916 = vmatpush2.msra.mxu0 0.0
        %917 = vmatprep.subr.mxu0 0.0
        %918 = vmatpush2.msra.mxu0 0.0
        %919 = vmatprep.subr.mxu0 0.0
        %920 = vmatpush2.msra.mxu0 0.0
        %921 = vmatprep.subr.mxu0 0.0
        %922 = vmatpush2.msra.mxu0 0.0
        %923 = vmatprep.subr.mxu0 0.0
        %924 = vmatpush2.msra.mxu0 0.0
        %925 = vmatprep.subr.mxu0 0.0
        %926 = vmatpush2.msra.mxu0 0.0
        %927 = vmatprep.subr.mxu0 0.0
        %928 = vmatpush2.msra.mxu0 0.0
        %929 = vmatprep.subr.mxu0 0.0
        %930 = vmatpush2.msra.mxu0 0.0
        %931 = vmatprep.subr.mxu0 0.0
        %932 = vmatpush2.msra.mxu0 0.0
        %933 = vmatprep.subr.mxu0 0.0
        %934 = vmatpush2.msra.mxu0 0.0
        %935 = vmatprep.subr.mxu0 0.0
        %936 = vmatpush2.msra.mxu0 0.0
        %937 = vmatprep.subr.mxu0 0.0
        %938 = vmatpush2.msra.mxu0 0.0
        %939 = vmatprep.subr.mxu0 0.0
        %940 = vmatpush2.msra.mxu0 0.0
        %941 = vmatprep.subr.mxu0 0.0
        %942 = vmatpush2.msra.mxu0 0.0
        %943 = vmatprep.mubr.f32.mxu0 0.0
        %944 = vmatmul.mubr.f32.gmra.mxu0 %v877
        %v945 = vpop.f32.mrf.mxu0
        %v946 = vadd.f32 0.0, %v945
        %v947 = vpop.f32.mrf.mxu0
        %948 = vdwg.mxu0
        %949 = vrot.lane.b32.xlu0 %v787, 120
        %v950 = vpop.permute.xlu0 %949
        %951 = vrot.lane.b32.xlu0 %v700, 120
        %v952 = vpop.permute.xlu0 %951
        %v953 = vsel %vm788, %v950, 0
        %v955 = vsel %vm788, %v952, 0
        %957 = vmatprep.subr.mxu0 0.0
        %958 = vmatpush1.xpose.msra.mxu0 0.0
        %959 = vmatprep.subr.mxu0 0.0
        %960 = vmatpush1.xpose.msra.mxu0 0.0
        %961 = vmatprep.subr.mxu0 0.0
        %962 = vmatpush1.xpose.msra.mxu0 0.0
        %963 = vmatprep.subr.mxu0 0.0
        %964 = vmatpush1.xpose.msra.mxu0 0.0
        %965 = vmatprep.subr.mxu0 0.0
        %966 = vmatpush1.xpose.msra.mxu0 0.0
        %967 = vmatprep.subr.mxu0 0.0
        %968 = vmatpush1.xpose.msra.mxu0 0.0
        %969 = vmatprep.subr.mxu0 0.0
        %970 = vmatpush1.xpose.msra.mxu0 0.0
        %971 = vmatprep.subr.mxu0 0.0
        %972 = vmatpush1.xpose.msra.mxu0 0.0
        %973 = vmatprep.subr.mxu0 0.0
        %974 = vmatpush1.xpose.msra.mxu0 0.0
        %975 = vmatprep.subr.mxu0 0.0
        %976 = vmatpush1.xpose.msra.mxu0 0.0
        %977 = vmatprep.subr.mxu0 0.0
        %978 = vmatpush1.xpose.msra.mxu0 0.0
        %979 = vmatprep.subr.mxu0 0.0
        %980 = vmatpush1.xpose.msra.mxu0 0.0
        %981 = vmatprep.subr.mxu0 0.0
        %982 = vmatpush1.xpose.msra.mxu0 0.0
        %983 = vmatprep.subr.mxu0 0.0
        %984 = vmatpush1.xpose.msra.mxu0 0.0
        %985 = vmatprep.subr.mxu0 0.0
        %986 = vmatpush1.xpose.msra.mxu0 0.0
        %987 = vmatprep.subr.mxu0 0.0
        %988 = vmatpush1.xpose.msra.mxu0 %v955
        %989 = vmatprep.subr.mxu0 0.0
        %990 = vmatpush2.xpose.msra.mxu0 0.0
        %991 = vmatprep.subr.mxu0 0.0
        %992 = vmatpush2.xpose.msra.mxu0 0.0
        %993 = vmatprep.subr.mxu0 0.0
        %994 = vmatpush2.xpose.msra.mxu0 0.0
        %995 = vmatprep.subr.mxu0 0.0
        %996 = vmatpush2.xpose.msra.mxu0 0.0
        %997 = vmatprep.subr.mxu0 0.0
        %998 = vmatpush2.xpose.msra.mxu0 0.0
        %999 = vmatprep.subr.mxu0 0.0
        %1000 = vmatpush2.xpose.msra.mxu0 0.0
        %1001 = vmatprep.subr.mxu0 0.0
        %1002 = vmatpush2.xpose.msra.mxu0 0.0
        %1003 = vmatprep.subr.mxu0 0.0
        %1004 = vmatpush2.xpose.msra.mxu0 0.0
        %1005 = vmatprep.subr.mxu0 0.0
        %1006 = vmatpush2.xpose.msra.mxu0 0.0
        %1007 = vmatprep.subr.mxu0 0.0
        %1008 = vmatpush2.xpose.msra.mxu0 0.0
        %1009 = vmatprep.subr.mxu0 0.0
        %1010 = vmatpush2.xpose.msra.mxu0 0.0
        %1011 = vmatprep.subr.mxu0 0.0
        %1012 = vmatpush2.xpose.msra.mxu0 0.0
        %1013 = vmatprep.subr.mxu0 0.0
        %1014 = vmatpush2.xpose.msra.mxu0 0.0
        %1015 = vmatprep.subr.mxu0 0.0
        %1016 = vmatpush2.xpose.msra.mxu0 0.0
        %1017 = vmatprep.subr.mxu0 0.0
        %1018 = vmatpush2.xpose.msra.mxu0 0.0
        %1019 = vmatprep.subr.mxu0 0.0
        %1020 = vmatpush2.xpose.msra.mxu0 0.0
        %1021 = vmatprep.mubr.f32.mxu0 0.0
        %1022 = vmatmul.mubr.f32.gmra.mxu0 %v953
        %v1023 = vpop.f32.mrf.mxu0
        %v1024 = vadd.f32 0.0, %v1023
        %v1025 = vpop.f32.mrf.mxu0
        %1026 = vdwg.mxu0
        %v1027 = vsel %vm788, %v1024, -inf
        %1028 = vmax.xlane.f32.xlu0 %v1027
        %v1029 = vpop.xlane.xlu0 %1028
        %v1030 = vsub.f32 %v1024, %v1029
        %v1031 = vmul.f32 %v1030, 1.442695
        %v1032 = vpow.pop %v1031
        %v1033 = vsel %vm788, %v1032, 0.0
        %1034 = vadd.xlane.f32.xlu0 %v1033
        %v1035 = vpop.xlane.xlu0 %1034
        %v1036 = vrcp.pop %v1035
        %v1037 = vmul.f32 %v1032, %v1036
        %1039 = vrot.lane.b32.xlu0 %v784, 120
        %v1040 = vpop.permute.xlu0 %1039
        %v1043 = vsel %vm788, %v1037, 0
        %1045 = vmatprep.subr.mxu0 0.0
        %1046 = vmatpush1.msra.mxu0 0.0
        %1047 = vmatprep.subr.mxu0 0.0
        %1048 = vmatpush1.msra.mxu0 0.0
        %1049 = vmatprep.subr.mxu0 0.0
        %1050 = vmatpush1.msra.mxu0 0.0
        %1051 = vmatprep.subr.mxu0 0.0
        %1052 = vmatpush1.msra.mxu0 0.0
        %1053 = vmatprep.subr.mxu0 0.0
        %1054 = vmatpush1.msra.mxu0 0.0
        %1055 = vmatprep.subr.mxu0 0.0
        %1056 = vmatpush1.msra.mxu0 0.0
        %1057 = vmatprep.subr.mxu0 0.0
        %1058 = vmatpush1.msra.mxu0 0.0
        %1059 = vmatprep.subr.mxu0 0.0
        %1060 = vmatpush1.msra.mxu0 0.0
        %1061 = vmatprep.subr.mxu0 0.0
        %1062 = vmatpush1.msra.mxu0 0.0
        %1063 = vmatprep.subr.mxu0 0.0
        %1064 = vmatpush1.msra.mxu0 0.0
        %1065 = vmatprep.subr.mxu0 0.0
        %1066 = vmatpush1.msra.mxu0 0.0
        %1067 = vmatprep.subr.mxu0 0.0
        %1068 = vmatpush1.msra.mxu0 0.0
        %1069 = vmatprep.subr.mxu0 0.0
        %1070 = vmatpush1.msra.mxu0 0.0
        %1071 = vmatprep.subr.mxu0 0.0
        %1072 = vmatpush1.msra.mxu0 0.0
        %1073 = vmatprep.subr.mxu0 0.0
        %1074 = vmatpush1.msra.mxu0 0.0
        %1075 = vmatprep.subr.mxu0 0.0
        %1076 = vmatpush1.msra.mxu0 %v1040
        %1077 = vmatprep.subr.mxu0 0.0
        %1078 = vmatpush2.msra.mxu0 0.0
        %1079 = vmatprep.subr.mxu0 0.0
        %1080 = vmatpush2.msra.mxu0 0.0
        %1081 = vmatprep.subr.mxu0 0.0
        %1082 = vmatpush2.msra.mxu0 0.0
        %1083 = vmatprep.subr.mxu0 0.0
        %1084 = vmatpush2.msra.mxu0 0.0
        %1085 = vmatprep.subr.mxu0 0.0
        %1086 = vmatpush2.msra.mxu0 0.0
        %1087 = vmatprep.subr.mxu0 0.0
        %1088 = vmatpush2.msra.mxu0 0.0
        %1089 = vmatprep.subr.mxu0 0.0
        %1090 = vmatpush2.msra.mxu0 0.0
        %1091 = vmatprep.subr.mxu0 0.0
        %1092 = vmatpush2.msra.mxu0 0.0
        %1093 = vmatprep.subr.mxu0 0.0
        %1094 = vmatpush2.msra.mxu0 0.0
        %1095 = vmatprep.subr.mxu0 0.0
        %1096 = vmatpush2.msra.mxu0 0.0
        %1097 = vmatprep.subr.mxu0 0.0
        %1098 = vmatpush2.msra.mxu0 0.0
        %1099 = vmatprep.subr.mxu0 0.0
        %1100 = vmatpush2.msra.mxu0 0.0
        %1101 = vmatprep.subr.mxu0 0.0
        %1102 = vmatpush2.msra.mxu0 0.0
        %1103 = vmatprep.subr.mxu0 0.0
        %1104 = vmatpush2.msra.mxu0 0.0
        %1105 = vmatprep.subr.mxu0 0.0
        %1106 = vmatpush2.msra.mxu0 0.0
        %1107 = vmatprep.subr.mxu0 0.0
        %1108 = vmatpush2.msra.mxu0 0.0
        %1109 = vmatprep.mubr.f32.mxu0 0.0
        %1110 = vmatmul.mubr.f32.gmra.mxu0 %v1043
        %v1111 = vpop.f32.mrf.mxu0
        %v1112 = vadd.f32 0.0, %v1111
        %v1113 = vpop.f32.mrf.mxu0
        %1114 = vdwg.mxu0
        %1115 = vrot.lane.b32.xlu0 %v787, 112
        %v1116 = vpop.permute.xlu0 %1115
        %1117 = vrot.lane.b32.xlu0 %v700, 112
        %v1118 = vpop.permute.xlu0 %1117
        %v1119 = vsel %vm788, %v1116, 0
        %v1121 = vsel %vm788, %v1118, 0
        %1123 = vmatprep.subr.mxu0 0.0
        %1124 = vmatpush1.xpose.msra.mxu0 0.0
        %1125 = vmatprep.subr.mxu0 0.0
        %1126 = vmatpush1.xpose.msra.mxu0 0.0
        %1127 = vmatprep.subr.mxu0 0.0
        %1128 = vmatpush1.xpose.msra.mxu0 0.0
        %1129 = vmatprep.subr.mxu0 0.0
        %1130 = vmatpush1.xpose.msra.mxu0 0.0
        %1131 = vmatprep.subr.mxu0 0.0
        %1132 = vmatpush1.xpose.msra.mxu0 0.0
        %1133 = vmatprep.subr.mxu0 0.0
        %1134 = vmatpush1.xpose.msra.mxu0 0.0
        %1135 = vmatprep.subr.mxu0 0.0
        %1136 = vmatpush1.xpose.msra.mxu0 0.0
        %1137 = vmatprep.subr.mxu0 0.0
        %1138 = vmatpush1.xpose.msra.mxu0 0.0
        %1139 = vmatprep.subr.mxu0 0.0
        %1140 = vmatpush1.xpose.msra.mxu0 0.0
        %1141 = vmatprep.subr.mxu0 0.0
        %1142 = vmatpush1.xpose.msra.mxu0 0.0
        %1143 = vmatprep.subr.mxu0 0.0
        %1144 = vmatpush1.xpose.msra.mxu0 0.0
        %1145 = vmatprep.subr.mxu0 0.0
        %1146 = vmatpush1.xpose.msra.mxu0 0.0
        %1147 = vmatprep.subr.mxu0 0.0
        %1148 = vmatpush1.xpose.msra.mxu0 0.0
        %1149 = vmatprep.subr.mxu0 0.0
        %1150 = vmatpush1.xpose.msra.mxu0 0.0
        %1151 = vmatprep.subr.mxu0 0.0
        %1152 = vmatpush1.xpose.msra.mxu0 0.0
        %1153 = vmatprep.subr.mxu0 0.0
        %1154 = vmatpush1.xpose.msra.mxu0 %v1121
        %1155 = vmatprep.subr.mxu0 0.0
        %1156 = vmatpush2.xpose.msra.mxu0 0.0
        %1157 = vmatprep.subr.mxu0 0.0
        %1158 = vmatpush2.xpose.msra.mxu0 0.0
        %1159 = vmatprep.subr.mxu0 0.0
        %1160 = vmatpush2.xpose.msra.mxu0 0.0
        %1161 = vmatprep.subr.mxu0 0.0
        %1162 = vmatpush2.xpose.msra.mxu0 0.0
        %1163 = vmatprep.subr.mxu0 0.0
        %1164 = vmatpush2.xpose.msra.mxu0 0.0
        %1165 = vmatprep.subr.mxu0 0.0
        %1166 = vmatpush2.xpose.msra.mxu0 0.0
        %1167 = vmatprep.subr.mxu0 0.0
        %1168 = vmatpush2.xpose.msra.mxu0 0.0
        %1169 = vmatprep.subr.mxu0 0.0
        %1170 = vmatpush2.xpose.msra.mxu0 0.0
        %1171 = vmatprep.subr.mxu0 0.0
        %1172 = vmatpush2.xpose.msra.mxu0 0.0
        %1173 = vmatprep.subr.mxu0 0.0
        %1174 = vmatpush2.xpose.msra.mxu0 0.0
        %1175 = vmatprep.subr.mxu0 0.0
        %1176 = vmatpush2.xpose.msra.mxu0 0.0
        %1177 = vmatprep.subr.mxu0 0.0
        %1178 = vmatpush2.xpose.msra.mxu0 0.0
        %1179 = vmatprep.subr.mxu0 0.0
        %1180 = vmatpush2.xpose.msra.mxu0 0.0
        %1181 = vmatprep.subr.mxu0 0.0
        %1182 = vmatpush2.xpose.msra.mxu0 0.0
        %1183 = vmatprep.subr.mxu0 0.0
        %1184 = vmatpush2.xpose.msra.mxu0 0.0
        %1185 = vmatprep.subr.mxu0 0.0
        %1186 = vmatpush2.xpose.msra.mxu0 0.0
        %1187 = vmatprep.mubr.f32.mxu0 0.0
        %1188 = vmatmul.mubr.f32.gmra.mxu0 %v1119
        %v1189 = vpop.f32.mrf.mxu0
        %v1190 = vadd.f32 0.0, %v1189
        %v1191 = vpop.f32.mrf.mxu0
        %1192 = vdwg.mxu0
        %v1193 = vsel %vm788, %v1190, -inf
        %1194 = vmax.xlane.f32.xlu0 %v1193
        %v1195 = vpop.xlane.xlu0 %1194
        %v1196 = vsub.f32 %v1190, %v1195
        %v1197 = vmul.f32 %v1196, 1.442695
        %v1198 = vpow.pop %v1197
        %v1199 = vsel %vm788, %v1198, 0.0
        %1200 = vadd.xlane.f32.xlu0 %v1199
        %v1201 = vpop.xlane.xlu0 %1200
        %v1202 = vrcp.pop %v1201
        %v1203 = vmul.f32 %v1198, %v1202
        %1204 = vrot.lane.b32.xlu0 %v784, 112
        %v1205 = vpop.permute.xlu0 %1204
        %v1208 = vsel %vm788, %v1203, 0
        %1210 = vmatprep.subr.mxu0 0.0
        %1211 = vmatpush1.msra.mxu0 0.0
        %1212 = vmatprep.subr.mxu0 0.0
        %1213 = vmatpush1.msra.mxu0 0.0
        %1214 = vmatprep.subr.mxu0 0.0
        %1215 = vmatpush1.msra.mxu0 0.0
        %1216 = vmatprep.subr.mxu0 0.0
        %1217 = vmatpush1.msra.mxu0 0.0
        %1218 = vmatprep.subr.mxu0 0.0
        %1219 = vmatpush1.msra.mxu0 0.0
        %1220 = vmatprep.subr.mxu0 0.0
        %1221 = vmatpush1.msra.mxu0 0.0
        %1222 = vmatprep.subr.mxu0 0.0
        %1223 = vmatpush1.msra.mxu0 0.0
        %1224 = vmatprep.subr.mxu0 0.0
        %1225 = vmatpush1.msra.mxu0 0.0
        %1226 = vmatprep.subr.mxu0 0.0
        %1227 = vmatpush1.msra.mxu0 0.0
        %1228 = vmatprep.subr.mxu0 0.0
        %1229 = vmatpush1.msra.mxu0 0.0
        %1230 = vmatprep.subr.mxu0 0.0
        %1231 = vmatpush1.msra.mxu0 0.0
        %1232 = vmatprep.subr.mxu0 0.0
        %1233 = vmatpush1.msra.mxu0 0.0
        %1234 = vmatprep.subr.mxu0 0.0
        %1235 = vmatpush1.msra.mxu0 0.0
        %1236 = vmatprep.subr.mxu0 0.0
        %1237 = vmatpush1.msra.mxu0 0.0
        %1238 = vmatprep.subr.mxu0 0.0
        %1239 = vmatpush1.msra.mxu0 0.0
        %1240 = vmatprep.subr.mxu0 0.0
        %1241 = vmatpush1.msra.mxu0 %v1205
        %1242 = vmatprep.subr.mxu0 0.0
        %1243 = vmatpush2.msra.mxu0 0.0
        %1244 = vmatprep.subr.mxu0 0.0
        %1245 = vmatpush2.msra.mxu0 0.0
        %1246 = vmatprep.subr.mxu0 0.0
        %1247 = vmatpush2.msra.mxu0 0.0
        %1248 = vmatprep.subr.mxu0 0.0
        %1249 = vmatpush2.msra.mxu0 0.0
        %1250 = vmatprep.subr.mxu0 0.0
        %1251 = vmatpush2.msra.mxu0 0.0
        %1252 = vmatprep.subr.mxu0 0.0
        %1253 = vmatpush2.msra.mxu0 0.0
        %1254 = vmatprep.subr.mxu0 0.0
        %1255 = vmatpush2.msra.mxu0 0.0
        %1256 = vmatprep.subr.mxu0 0.0
        %1257 = vmatpush2.msra.mxu0 0.0
        %1258 = vmatprep.subr.mxu0 0.0
        %1259 = vmatpush2.msra.mxu0 0.0
        %1260 = vmatprep.subr.mxu0 0.0
        %1261 = vmatpush2.msra.mxu0 0.0
        %1262 = vmatprep.subr.mxu0 0.0
        %1263 = vmatpush2.msra.mxu0 0.0
        %1264 = vmatprep.subr.mxu0 0.0
        %1265 = vmatpush2.msra.mxu0 0.0
        %1266 = vmatprep.subr.mxu0 0.0
        %1267 = vmatpush2.msra.mxu0 0.0
        %1268 = vmatprep.subr.mxu0 0.0
        %1269 = vmatpush2.msra.mxu0 0.0
        %1270 = vmatprep.subr.mxu0 0.0
        %1271 = vmatpush2.msra.mxu0 0.0
        %1272 = vmatprep.subr.mxu0 0.0
        %1273 = vmatpush2.msra.mxu0 0.0
        %1274 = vmatprep.mubr.f32.mxu0 0.0
        %1275 = vmatmul.mubr.f32.gmra.mxu0 %v1208
        %v1276 = vpop.f32.mrf.mxu0
        %v1277 = vadd.f32 0.0, %v1276
        %v1278 = vpop.f32.mrf.mxu0
        %1279 = vdwg.mxu0
        %1280 = vrot.lane.b32.xlu0 %v787, 104
        %v1281 = vpop.permute.xlu0 %1280
        %1282 = vrot.lane.b32.xlu0 %v700, 104
        %v1283 = vpop.permute.xlu0 %1282
        %v1284 = vsel %vm788, %v1281, 0
        %v1286 = vsel %vm788, %v1283, 0
        %1288 = vmatprep.subr.mxu0 0.0
        %1289 = vmatpush1.xpose.msra.mxu0 0.0
        %1290 = vmatprep.subr.mxu0 0.0
        %1291 = vmatpush1.xpose.msra.mxu0 0.0
        %1292 = vmatprep.subr.mxu0 0.0
        %1293 = vmatpush1.xpose.msra.mxu0 0.0
        %1294 = vmatprep.subr.mxu0 0.0
        %1295 = vmatpush1.xpose.msra.mxu0 0.0
        %1296 = vmatprep.subr.mxu0 0.0
        %1297 = vmatpush1.xpose.msra.mxu0 0.0
        %1298 = vmatprep.subr.mxu0 0.0
        %1299 = vmatpush1.xpose.msra.mxu0 0.0
        %1300 = vmatprep.subr.mxu0 0.0
        %1301 = vmatpush1.xpose.msra.mxu0 0.0
        %1302 = vmatprep.subr.mxu0 0.0
        %1303 = vmatpush1.xpose.msra.mxu0 0.0
        %1304 = vmatprep.subr.mxu0 0.0
        %1305 = vmatpush1.xpose.msra.mxu0 0.0
        %1306 = vmatprep.subr.mxu0 0.0
        %1307 = vmatpush1.xpose.msra.mxu0 0.0
        %1308 = vmatprep.subr.mxu0 0.0
        %1309 = vmatpush1.xpose.msra.mxu0 0.0
        %1310 = vmatprep.subr.mxu0 0.0
        %1311 = vmatpush1.xpose.msra.mxu0 0.0
        %1312 = vmatprep.subr.mxu0 0.0
        %1313 = vmatpush1.xpose.msra.mxu0 0.0
        %1314 = vmatprep.subr.mxu0 0.0
        %1315 = vmatpush1.xpose.msra.mxu0 0.0
        %1316 = vmatprep.subr.mxu0 0.0
        %1317 = vmatpush1.xpose.msra.mxu0 0.0
        %1318 = vmatprep.subr.mxu0 0.0
        %1319 = vmatpush1.xpose.msra.mxu0 %v1286
        %1320 = vmatprep.subr.mxu0 0.0
        %1321 = vmatpush2.xpose.msra.mxu0 0.0
        %1322 = vmatprep.subr.mxu0 0.0
        %1323 = vmatpush2.xpose.msra.mxu0 0.0
        %1324 = vmatprep.subr.mxu0 0.0
        %1325 = vmatpush2.xpose.msra.mxu0 0.0
        %1326 = vmatprep.subr.mxu0 0.0
        %1327 = vmatpush2.xpose.msra.mxu0 0.0
        %1328 = vmatprep.subr.mxu0 0.0
        %1329 = vmatpush2.xpose.msra.mxu0 0.0
        %1330 = vmatprep.subr.mxu0 0.0
        %1331 = vmatpush2.xpose.msra.mxu0 0.0
        %1332 = vmatprep.subr.mxu0 0.0
        %1333 = vmatpush2.xpose.msra.mxu0 0.0
        %1334 = vmatprep.subr.mxu0 0.0
        %1335 = vmatpush2.xpose.msra.mxu0 0.0
        %1336 = vmatprep.subr.mxu0 0.0
        %1337 = vmatpush2.xpose.msra.mxu0 0.0
        %1338 = vmatprep.subr.mxu0 0.0
        %1339 = vmatpush2.xpose.msra.mxu0 0.0
        %1340 = vmatprep.subr.mxu0 0.0
        %1341 = vmatpush2.xpose.msra.mxu0 0.0
        %1342 = vmatprep.subr.mxu0 0.0
        %1343 = vmatpush2.xpose.msra.mxu0 0.0
        %1344 = vmatprep.subr.mxu0 0.0
        %1345 = vmatpush2.xpose.msra.mxu0 0.0
        %1346 = vmatprep.subr.mxu0 0.0
        %1347 = vmatpush2.xpose.msra.mxu0 0.0
        %1348 = vmatprep.subr.mxu0 0.0
        %1349 = vmatpush2.xpose.msra.mxu0 0.0
        %1350 = vmatprep.subr.mxu0 0.0
        %1351 = vmatpush2.xpose.msra.mxu0 0.0
        %1352 = vmatprep.mubr.f32.mxu0 0.0
        %1353 = vmatmul.mubr.f32.gmra.mxu0 %v1284
        %v1354 = vpop.f32.mrf.mxu0
        %v1355 = vadd.f32 0.0, %v1354
        %v1356 = vpop.f32.mrf.mxu0
        %1357 = vdwg.mxu0
        %v1358 = vsel %vm788, %v1355, -inf
        %1359 = vmax.xlane.f32.xlu0 %v1358
        %v1360 = vpop.xlane.xlu0 %1359
        %v1361 = vsub.f32 %v1355, %v1360
        %v1362 = vmul.f32 %v1361, 1.442695
        %v1363 = vpow.pop %v1362
        %v1364 = vsel %vm788, %v1363, 0.0
        %1365 = vadd.xlane.f32.xlu0 %v1364
        %v1366 = vpop.xlane.xlu0 %1365
        %v1367 = vrcp.pop %v1366
        %v1368 = vmul.f32 %v1363, %v1367
        %1369 = vrot.lane.b32.xlu0 %v784, 104
        %v1370 = vpop.permute.xlu0 %1369
        %v1373 = vsel %vm788, %v1368, 0
        %1375 = vmatprep.subr.mxu0 0.0
        %1376 = vmatpush1.msra.mxu0 0.0
        %1377 = vmatprep.subr.mxu0 0.0
        %1378 = vmatpush1.msra.mxu0 0.0
        %1379 = vmatprep.subr.mxu0 0.0
        %1380 = vmatpush1.msra.mxu0 0.0
        %1381 = vmatprep.subr.mxu0 0.0
        %1382 = vmatpush1.msra.mxu0 0.0
        %1383 = vmatprep.subr.mxu0 0.0
        %1384 = vmatpush1.msra.mxu0 0.0
        %1385 = vmatprep.subr.mxu0 0.0
        %1386 = vmatpush1.msra.mxu0 0.0
        %1387 = vmatprep.subr.mxu0 0.0
        %1388 = vmatpush1.msra.mxu0 0.0
        %1389 = vmatprep.subr.mxu0 0.0
        %1390 = vmatpush1.msra.mxu0 0.0
        %1391 = vmatprep.subr.mxu0 0.0
        %1392 = vmatpush1.msra.mxu0 0.0
        %1393 = vmatprep.subr.mxu0 0.0
        %1394 = vmatpush1.msra.mxu0 0.0
        %1395 = vmatprep.subr.mxu0 0.0
        %1396 = vmatpush1.msra.mxu0 0.0
        %1397 = vmatprep.subr.mxu0 0.0
        %1398 = vmatpush1.msra.mxu0 0.0
        %1399 = vmatprep.subr.mxu0 0.0
        %1400 = vmatpush1.msra.mxu0 0.0
        %1401 = vmatprep.subr.mxu0 0.0
        %1402 = vmatpush1.msra.mxu0 0.0
        %1403 = vmatprep.subr.mxu0 0.0
        %1404 = vmatpush1.msra.mxu0 0.0
        %1405 = vmatprep.subr.mxu0 0.0
        %1406 = vmatpush1.msra.mxu0 %v1370
        %1407 = vmatprep.subr.mxu0 0.0
        %1408 = vmatpush2.msra.mxu0 0.0
        %1409 = vmatprep.subr.mxu0 0.0
        %1410 = vmatpush2.msra.mxu0 0.0
        %1411 = vmatprep.subr.mxu0 0.0
        %1412 = vmatpush2.msra.mxu0 0.0
        %1413 = vmatprep.subr.mxu0 0.0
        %1414 = vmatpush2.msra.mxu0 0.0
        %1415 = vmatprep.subr.mxu0 0.0
        %1416 = vmatpush2.msra.mxu0 0.0
        %1417 = vmatprep.subr.mxu0 0.0
        %1418 = vmatpush2.msra.mxu0 0.0
        %1419 = vmatprep.subr.mxu0 0.0
        %1420 = vmatpush2.msra.mxu0 0.0
        %1421 = vmatprep.subr.mxu0 0.0
        %1422 = vmatpush2.msra.mxu0 0.0
        %1423 = vmatprep.subr.mxu0 0.0
        %1424 = vmatpush2.msra.mxu0 0.0
        %1425 = vmatprep.subr.mxu0 0.0
        %1426 = vmatpush2.msra.mxu0 0.0
        %1427 = vmatprep.subr.mxu0 0.0
        %1428 = vmatpush2.msra.mxu0 0.0
        %1429 = vmatprep.subr.mxu0 0.0
        %1430 = vmatpush2.msra.mxu0 0.0
        %1431 = vmatprep.subr.mxu0 0.0
        %1432 = vmatpush2.msra.mxu0 0.0
        %1433 = vmatprep.subr.mxu0 0.0
        %1434 = vmatpush2.msra.mxu0 0.0
        %1435 = vmatprep.subr.mxu0 0.0
        %1436 = vmatpush2.msra.mxu0 0.0
        %1437 = vmatprep.subr.mxu0 0.0
        %1438 = vmatpush2.msra.mxu0 0.0
        %1439 = vmatprep.mubr.f32.mxu0 0.0
        %1440 = vmatmul.mubr.f32.gmra.mxu0 %v1373
        %v1441 = vpop.f32.mrf.mxu0
        %v1442 = vadd.f32 0.0, %v1441
        %v1443 = vpop.f32.mrf.mxu0
        %1444 = vdwg.mxu0
        %1446 = vrot.lane.b32.xlu0 %v1112, 8
        %v1447 = vpop.permute.xlu0 %1446
        %1450 = vrot.lane.b32.xlu0 %v1277, 16
        %v1451 = vpop.permute.xlu0 %1450
        %1454 = vrot.lane.b32.xlu0 %v1442, 24
        %v1455 = vpop.permute.xlu0 %1454
        %v1457 = vsel %vm788, %v946, %v1447
        %vm1458 = vcmask 130048
        %v1459 = vsel %vm1458, %v1457, %v1451
        %vm1460 = vcmask 195584
        %v1461 = vsel %vm1460, %v1459, %v1455
        %v1462 = vld [vmem:[#allocation13] sm:$0xff]
        %v1463 = vld [vmem:[#allocation13 + $0x8] sm:$0xff]
        %v1464 = vld [vmem:[#allocation13 + $0x10] sm:$0xff]
        %v1465 = vld [vmem:[#allocation13 + $0x18] sm:$0xff]
        %v1466 = vld [vmem:[%s10] sm:$0x1]
        %v1468 = vlaneseq
        %v1469 = vshrl.u32 %v1468, 7
        %v1470 = vsub.s32 0, %v1469
        %v1471 = vrot.slane %v1466, %v1470
        %v1474 = vsel %vm545, %v1461, 0
        %1476 = vmatprep.subr.mxu0 0.0
        %1477 = vmatpush1.msra.mxu0 0.0
        %1478 = vmatprep.subr.mxu0 0.0
        %1479 = vmatpush1.msra.mxu0 0.0
        %1480 = vmatprep.subr.mxu0 0.0
        %1481 = vmatpush1.msra.mxu0 0.0
        %1482 = vmatprep.subr.mxu0 0.0
        %1483 = vmatpush1.msra.mxu0 0.0
        %1484 = vmatprep.subr.mxu0 0.0
        %1485 = vmatpush1.msra.mxu0 0.0
        %1486 = vmatprep.subr.mxu0 0.0
        %1487 = vmatpush1.msra.mxu0 0.0
        %1488 = vmatprep.subr.mxu0 0.0
        %1489 = vmatpush1.msra.mxu0 0.0
        %1490 = vmatprep.subr.mxu0 0.0
        %1491 = vmatpush1.msra.mxu0 0.0
        %1492 = vmatprep.subr.mxu0 0.0
        %1493 = vmatpush1.msra.mxu0 0.0
        %1494 = vmatprep.subr.mxu0 0.0
        %1495 = vmatpush1.msra.mxu0 0.0
        %1496 = vmatprep.subr.mxu0 0.0
        %1497 = vmatpush1.msra.mxu0 0.0
        %1498 = vmatprep.subr.mxu0 0.0
        %1499 = vmatpush1.msra.mxu0 0.0
        %1500 = vmatprep.subr.mxu0 0.0
        %1501 = vmatpush1.msra.mxu0 %v1465
        %1502 = vmatprep.subr.mxu0 0.0
        %1503 = vmatpush1.msra.mxu0 %v1464
        %1504 = vmatprep.subr.mxu0 0.0
        %1505 = vmatpush1.msra.mxu0 %v1463
        %1506 = vmatprep.subr.mxu0 0.0
        %1507 = vmatpush1.msra.mxu0 %v1462
        %1508 = vmatprep.subr.mxu0 0.0
        %1509 = vmatpush2.msra.mxu0 0.0
        %1510 = vmatprep.subr.mxu0 0.0
        %1511 = vmatpush2.msra.mxu0 0.0
        %1512 = vmatprep.subr.mxu0 0.0
        %1513 = vmatpush2.msra.mxu0 0.0
        %1514 = vmatprep.subr.mxu0 0.0
        %1515 = vmatpush2.msra.mxu0 0.0
        %1516 = vmatprep.subr.mxu0 0.0
        %1517 = vmatpush2.msra.mxu0 0.0
        %1518 = vmatprep.subr.mxu0 0.0
        %1519 = vmatpush2.msra.mxu0 0.0
        %1520 = vmatprep.subr.mxu0 0.0
        %1521 = vmatpush2.msra.mxu0 0.0
        %1522 = vmatprep.subr.mxu0 0.0
        %1523 = vmatpush2.msra.mxu0 0.0
        %1524 = vmatprep.subr.mxu0 0.0
        %1525 = vmatpush2.msra.mxu0 0.0
        %1526 = vmatprep.subr.mxu0 0.0
        %1527 = vmatpush2.msra.mxu0 0.0
        %1528 = vmatprep.subr.mxu0 0.0
        %1529 = vmatpush2.msra.mxu0 0.0
        %1530 = vmatprep.subr.mxu0 0.0
        %1531 = vmatpush2.msra.mxu0 0.0
        %1532 = vmatprep.subr.mxu0 0.0
        %1533 = vmatpush2.msra.mxu0 0.0
        %1534 = vmatprep.subr.mxu0 0.0
        %1535 = vmatpush2.msra.mxu0 0.0
        %1536 = vmatprep.subr.mxu0 0.0
        %1537 = vmatpush2.msra.mxu0 0.0
        %1538 = vmatprep.subr.mxu0 0.0
        %1539 = vmatpush2.msra.mxu0 0.0
        %1540 = vmatprep.mubr.f32.mxu0 0.0
        %1541 = vmatmul.mubr.f32.gmra.mxu0 %v1474
        %v1542 = vpop.f32.mrf.mxu0
        %v1543 = vadd.f32 %v1471, %v1542
        %v1544 = vpop.f32.mrf.mxu0
        %1545 = vdwg.mxu0
        %1546 = vst.msk [vmem:[%s530] sm:$0xff] %vm545, %v1543
        %s1547 = sand.u32 %s287, 1
        %s1548 = scalar_lea.sflag [#allocation4], %s1547
        %s1549 = sand.u32 %s287, 1
        %s1550 = smul.addr %s1549, 8
        %s1551 = scalar_lea.vmem [#allocation14], %s1550
        // Predicated region
        $region93: #{tpu_custom_call.1} parent=63 // pred_check
          %p1552 = pneg %p297
        $region94: #{tpu_custom_call.1} parent=63 // pred_check_branch
          %1554 = sbr.rel (%p1552) target = $region96
        $region95: #{tpu_custom_call.1} parent=63 // pred_region
          %s1556 = ssub.s32 128, 128
          %1557 = vsyncadd %s1548, %s1556
          %s1558 = smul.addr %s33, 128
          %s1559 = scalar_lea.hbm %s11, %s1558
          %s1561 = sshll.u32 %s1551, 4
          %s1562 = int_to_ptr.vmem [resolvable:$true] %s1561
          %1564 = dma.vmem_to_hbm [thread:$0]  %s1562, 128, %s1559, %s1548
        $region96: #{tpu_custom_call.1} parent=63 // pred_fallthru
          _
      $region64: #{tpu_custom_call.1} parent=5 // pred_fallthru
        _
      %p1565 = scmp.le.s32.totalorder 2, %s28
      // Predicated region
      $region97: #{tpu_custom_call.1} parent=5 // pred_check
        %p1566 = pneg %p1565
      $region98: #{tpu_custom_call.1} parent=5 // pred_check_branch
        %1568 = sbr.rel (%p1566) target = $region100
      $region99: #{tpu_custom_call.1} parent=5 // pred_region
        %s1569 = ssub.s32 %s28, 2
        // Predicated region
        $region101: #{tpu_custom_call.1} parent=99 // pred_check
          %p1570 = pneg %p303
        $region102: #{tpu_custom_call.1} parent=99 // pred_check_branch
          %1572 = sbr.rel (%p1570) target = $region104
        $region103: #{tpu_custom_call.1} parent=99 // pred_region
          %s1573 = sand.u32 %s288, 1
          %s1574 = scalar_lea.sflag [#allocation4], %s1573
          %s1575 = sand.u32 %s288, 1
          %s1576 = smul.addr %s1575, 8
          %s1577 = scalar_lea.vmem [#allocation14], %s1576
          %1578 = dma.done %s1574, 128
        $region104: #{tpu_custom_call.1} parent=99 // pred_fallthru
          _
      $region100: #{tpu_custom_call.1} parent=5 // pred_fallthru
        _
    $region6: #{tpu_custom_call.1} parent=1 // loop_footer
      %s32 = sadd.s32 1, %s28
    $region7: #{tpu_custom_call.1} parent=1 // loop_footer_branch
      %27 = sbr.rel target = $region3
    $region8: #{tpu_custom_call.1} parent=1 // loop_exit
      _
    %1579 = vsyncpa [#allocation3], 1
    %s1580 = scalar_lea.sflag [#allocation3], 1
    %1581 = vsyncpa %s1580, 1
    %1582 = vsyncpa [#allocation6], 1
    %s1583 = scalar_lea.sflag [#allocation6], 1
    %1584 = vsyncpa %s1583, 1
    %1585 = vsyncpa [#allocation9], 1
    %1586 = vsyncpa [#allocation12], 1
    %1587 = vsyncpa [#allocation4], 1
    %s1588 = scalar_lea.sflag [#allocation4], 1
    %1589 = vsyncpa %s1588, 1

</llo_original>
